<compile_context>
chip_gen: v5e
topology: v5e:2x2
jax: 0.10.0
libtpu: 0.0.40
codegen_flags: <defaults>
</compile_context>

<pallas_src>
import functools
import math

import jax
import jax.numpy as jnp
from jax.experimental import pallas as pl
from jax.experimental.pallas import tpu as pltpu

N_QUBITS = 2
N_ACTIONS = 3
LANES = 128      # batch maps to lanes (and sublanes): fully dense vregs
SUB = 8          # sublanes per compute sub-tile (one f32 vreg)

# amplitude index = 2*b0 + b1 (wire 0 is the most-significant bit, PennyLane convention)
_PAIRS_Q0 = ((0, 2), (1, 3))
_PAIRS_Q1 = ((0, 1), (2, 3))


def quantumnet_kernel(x_ref, wi_ref, yc_ref, ys_ref, dc_ref, ds_ref, a_ref, c_ref,
                      out_ref, *, n_layers, data_reupload, sub_tiles):
    """Lane-dense QuantumNet forward.

    x_ref  : (2, BLOCK_ROWS, 128) VMEM   feature-major, batch on (sublane, lane)
    out_ref: (3, BLOCK_ROWS, 128) VMEM   action-major, full-width stores
    All parameters are small flattened f32 vectors living in SMEM.
    """
    for t in range(sub_tiles):
        r0 = t * SUB
        u0 = x_ref[0, r0:r0 + SUB, :] * wi_ref[0]     # (8, 128)
        u1 = x_ref[1, r0:r0 + SUB, :] * wi_ref[1]

        # half-angle trig of theta = atan(u):
        #   cos(theta)   = rsqrt(1 + u^2)
        #   cos(theta/2) = sqrt((1 + cos)/2)                     (always >= sqrt(2)/2)
        #   sin(theta/2) = sin(theta)/(2 cos(theta/2)) = u*cos / (2 cos(theta/2))
        def half_angle(u):
            c = jax.lax.rsqrt(1.0 + u * u)
            ch = jnp.sqrt((1.0 + c) * 0.5)
            sh = (0.5 * u) * c / ch
            return ch, sh

        ch0, sh0 = half_angle(u0)
        ch1, sh1 = half_angle(u1)

        zeros = jnp.zeros_like(u0)
        # initial state = RX(theta0) (x) RX(theta1) applied to |00>  (product state)
        ar = [ch0 * ch1, zeros, zeros, -(sh0 * sh1)]
        ai = [zeros, -(ch0 * sh1), -(sh0 * ch1), zeros]

        def rx(pairs, c, s):                 # [[c, -i s], [-i s, c]]
            for (hi, lo) in pairs:
                nrt = c * ar[hi] + s * ai[lo]
                nit = c * ai[hi] - s * ar[lo]
                nrb = s * ai[hi] + c * ar[lo]
                nib = -s * ar[hi] + c * ai[lo]
                ar[hi], ai[hi], ar[lo], ai[lo] = nrt, nit, nrb, nib

        def ry(pairs, c, s):                 # [[c, -s], [s, c]]  (real, scalar coeffs)
            for (hi, lo) in pairs:
                nrt = c * ar[hi] - s * ar[lo]
                nit = c * ai[hi] - s * ai[lo]
                nrb = s * ar[hi] + c * ar[lo]
                nib = s * ai[hi] + c * ai[lo]
                ar[hi], ai[hi], ar[lo], ai[lo] = nrt, nit, nrb, nib

        def rz_rz_cz(layer):                 # fused RZ(w0)·RZ(w1)·CZ diagonal phases
            for k in range(4):
                cph = dc_ref[4 * layer + k]
                sph = ds_ref[4 * layer + k]
                nr = ar[k] * cph - ai[k] * sph
                ni = ar[k] * sph + ai[k] * cph
                ar[k], ai[k] = nr, ni

        for l in range(n_layers):
            if l > 0 and data_reupload:      # layer-0 encoding is in the initial state
                rx(_PAIRS_Q0, ch0, sh0)
                rx(_PAIRS_Q1, ch1, sh1)
            ry(_PAIRS_Q0, yc_ref[2 * l + 0], ys_ref[2 * l + 0])
            ry(_PAIRS_Q1, yc_ref[2 * l + 1], ys_ref[2 * l + 1])
            rz_rz_cz(l)

        # probabilities + folded readout affine:  out_j = sum_k A[j,k] p_k + c_j
        p = [ar[k] * ar[k] + ai[k] * ai[k] for k in range(4)]
        for j in range(N_ACTIONS):
            oj = (p[0] * a_ref[4 * j + 0] + p[1] * a_ref[4 * j + 1]
                  + p[2] * a_ref[4 * j + 2] + p[3] * a_ref[4 * j + 3] + c_ref[j])
            out_ref[j, r0:r0 + SUB, :] = oj   # full-width unmasked store


def quantum_net_forward(x, params, *, n_layers, data_reupload, max_block_rows=32):
    """x: (B, 2) float32 -> (B, 3) float32.  Handles ragged B by padding."""
    assert max_block_rows % SUB == 0
    wi, yw, zw, w1, b1, wo = params

    # trainable RY half-angle trig, flattened layer-major: index 2*l + wire
    yc = jnp.cos(yw * 0.5).reshape(-1).astype(jnp.float32)
    ys = jnp.sin(yw * 0.5).reshape(-1).astype(jnp.float32)

    # fused RZ(0)·RZ(1)·CZ diagonal: phase phi_k per basis state k = 2*b0 + b1
    s0 = jnp.array([-1.0, -1.0, 1.0, 1.0], jnp.float32)   # wire-0 bit sign
    s1 = jnp.array([-1.0, 1.0, -1.0, 1.0], jnp.float32)   # wire-1 bit sign
    phi = 0.5 * (zw[:, 0:1] * s0[None, :] + zw[:, 1:2] * s1[None, :])   # (L, 4)
    phi = phi.at[:, 3].add(jnp.pi)                                      # CZ on |11>
    dc = jnp.cos(phi).reshape(-1).astype(jnp.float32)
    ds = jnp.sin(phi).reshape(-1).astype(jnp.float32)

    # readout folded into a 3x4 affine over probabilities:
    #   out_j = wo_j*(w1[j,0]*(1+z0)/2 + w1[j,1]*(1+z1)/2 + b1[j])
    g0 = jnp.array([1.0, 1.0, -1.0, -1.0], jnp.float32)   # z0 = sum g0[k] p_k
    g1 = jnp.array([1.0, -1.0, 1.0, -1.0], jnp.float32)   # z1 = sum g1[k] p_k
    A = 0.5 * wo[:, None] * (w1[:, 0:1] * g0[None, :] + w1[:, 1:2] * g1[None, :])
    A = A.reshape(-1).astype(jnp.float32)                               # (12,)
    cvec = (wo * (b1 + 0.5 * (w1[:, 0] + w1[:, 1]))).astype(jnp.float32)

    b = x.shape[0]
    rows = pl.cdiv(max(b, 1), LANES)
    rows = pl.cdiv(rows, SUB) * SUB                     # multiple of 8 sublanes
    block_rows = min(rows, max_block_rows)              # multiple of 8
    rows = pl.cdiv(rows, block_rows) * block_rows
    b_pad = rows * LANES

    # lane-dense layout: (B, 2) -> (2, b_pad) -> (2, rows, 128)
    xt = jnp.zeros((N_QUBITS, b_pad), jnp.float32)
    xt = xt.at[:, :b].set(x.T.astype(jnp.float32))
    xt = xt.reshape(N_QUBITS, rows, LANES)

    kernel = functools.partial(quantumnet_kernel, n_layers=n_layers,
                               data_reupload=data_reupload,
                               sub_tiles=block_rows // SUB)
    smem = pl.BlockSpec(memory_space=pltpu.MemorySpace.SMEM)
    out = pl.pallas_call(
        kernel,
        out_shape=jax.ShapeDtypeStruct((N_ACTIONS, rows, LANES), jnp.float32),
        grid=(rows // block_rows,),
        in_specs=[pl.BlockSpec((N_QUBITS, block_rows, LANES), lambda i: (0, i, 0))]
                 + [smem] * 7,
        out_specs=pl.BlockSpec((N_ACTIONS, block_rows, LANES), lambda i: (0, i, 0)),
        compiler_params=pltpu.CompilerParams(dimension_semantics=("parallel",)),
    )(xt, wi.astype(jnp.float32), yc, ys, dc, ds, A, cvec)

    return out.reshape(N_ACTIONS, b_pad)[:, :b].T       # (B, 3)


def reference_forward(x, params, *, n_layers, data_reupload):
    """Pure-JAX reference (explicit complex state-vector simulation with atan)."""
    wi, yw, zw, w1, b1, wo = params
    theta = jnp.arctan(x * wi)                      # (B, 2)
    b = x.shape[0]
    state = jnp.zeros((b, 4), jnp.complex64).at[:, 0].set(1.0)

    def apply_1q(state, mat, wire):
        pairs = _PAIRS_Q0 if wire == 0 else _PAIRS_Q1
        new = state
        for (t, bo) in pairs:
            st, sb = state[:, t], state[:, bo]
            new = new.at[:, t].set(mat[0][0] * st + mat[0][1] * sb)
            new = new.at[:, bo].set(mat[1][0] * st + mat[1][1] * sb)
        return new

    def rx_mat(t):
        c, s = jnp.cos(t / 2), jnp.sin(t / 2)
        return [[c + 0j, -1j * s], [-1j * s, c + 0j]]

    def ry_mat(t):
        c, s = jnp.cos(t / 2), jnp.sin(t / 2)
        return [[c + 0j, -s + 0j], [s + 0j, c + 0j]]

    def rz_mat(t):
        return [[jnp.exp(-1j * t / 2), 0.0 + 0j], [0.0 + 0j, jnp.exp(1j * t / 2)]]

    for l in range(n_layers):
        if l == 0 or data_reupload:
            state = apply_1q(state, rx_mat(theta[:, 0]), 0)
            state = apply_1q(state, rx_mat(theta[:, 1]), 1)
        for q in range(N_QUBITS):
            state = apply_1q(state, ry_mat(yw[l, q]), q)
        for q in range(N_QUBITS):
            state = apply_1q(state, rz_mat(zw[l, q]), q)
        state = state.at[:, 3].multiply(-1.0)       # CZ(0,1)

    p = jnp.abs(state) ** 2
    z0 = p[:, 0] + p[:, 1] - p[:, 2] - p[:, 3]
    z1 = p[:, 0] - p[:, 1] + p[:, 2] - p[:, 3]
    q = (1.0 + jnp.stack([z0, z1], axis=-1)) / 2.0
    out = q @ w1.T + b1
    return out * wo


if __name__ == "__main__":
    n_layers = 5

    key = jax.random.PRNGKey(0)
    ks = jax.random.split(key, 8)

    # deterministic synthetic parameters (shapes from QuantumNet.__init__)
    w_input = jax.random.normal(ks[1], (N_QUBITS,), jnp.float32)                        # nn.init.normal_
    y_weights = jax.random.uniform(ks[2], (n_layers, N_QUBITS), jnp.float32, 0.0, 2 * math.pi)
    z_weights = jax.random.uniform(ks[3], (n_layers, N_QUBITS), jnp.float32, 0.0, 2 * math.pi)
    bound = 1.0 / math.sqrt(N_QUBITS)
    layer1_w = jax.random.uniform(ks[4], (N_ACTIONS, N_QUBITS), jnp.float32, -bound, bound)
    layer1_b = jax.random.uniform(ks[5], (N_ACTIONS,), jnp.float32, -bound, bound)
    w_output = 90.0 + jax.random.normal(ks[6], (N_ACTIONS,), jnp.float32)               # normal(mean=90)
    params = (w_input, y_weights, z_weights, layer1_w, layer1_b, w_output)

    checks = [
        (8, True),      # small batch, data re-uploading
        (8, False),     # small batch, no re-uploading
        (2048, True),   # multi-sub-tile block path
    ]
    for batch, reup in checks:
        x = jax.random.normal(ks[0], (batch, N_QUBITS), jnp.float32)
        out = quantum_net_forward(x, params, n_layers=n_layers, data_reupload=reup)
        out = jax.block_until_ready(out)
        ref = reference_forward(x, params, n_layers=n_layers, data_reupload=reup)
        assert out.shape == (batch, N_ACTIONS)
        assert jnp.allclose(out, ref, rtol=1e-4, atol=1e-3), (batch, reup, out, ref)

    print("KERNEL_OK")
</pallas_src>

<mosaic_0001>
module attributes {stable_mosaic.version = 11 : i64} {
  func.func @quantumnet_kernel(%arg0: i32, %arg1: memref<2x8x128xf32, #tpu.memory_space<vmem>>, %arg2: memref<2xf32, #tpu.memory_space<smem>>, %arg3: memref<10xf32, #tpu.memory_space<smem>>, %arg4: memref<10xf32, #tpu.memory_space<smem>>, %arg5: memref<20xf32, #tpu.memory_space<smem>>, %arg6: memref<20xf32, #tpu.memory_space<smem>>, %arg7: memref<12xf32, #tpu.memory_space<smem>>, %arg8: memref<3xf32, #tpu.memory_space<smem>>, %arg9: memref<3x8x128xf32, #tpu.memory_space<vmem>>) attributes {dimension_semantics = [#tpu.dimension_semantics<parallel>], iteration_bounds = array<i64: 1>, scalar_prefetch = 0 : i64, scratch_operands = 0 : i64, tpu.core_type = #tpu.core_type<tc>, window_params = [{transform_indices = @transform_0, window_bounds = array<i64: 2, 8, 128>}, {transform_indices = @transform_1, window_bounds = array<i64: 2>}, {transform_indices = @transform_2, window_bounds = array<i64: 10>}, {transform_indices = @transform_3, window_bounds = array<i64: 10>}, {transform_indices = @transform_4, window_bounds = array<i64: 20>}, {transform_indices = @transform_5, window_bounds = array<i64: 20>}, {transform_indices = @transform_6, window_bounds = array<i64: 12>}, {transform_indices = @transform_7, window_bounds = array<i64: 3>}, {transform_indices = @transform_8, window_bounds = array<i64: 3, 8, 128>}]} {
    %c0 = arith.constant 0 : index
    %c0_0 = arith.constant 0 : index
    %c0_1 = arith.constant 0 : index
    %0 = vector.load %arg1[%c0, %c0_0, %c0_1] : memref<2x8x128xf32, #tpu.memory_space<vmem>>, vector<1x8x128xf32>
    %1 = vector.shape_cast %0 : vector<1x8x128xf32> to vector<8x128xf32>
    %c0_2 = arith.constant 0 : index
    %2 = memref.load %arg2[%c0_2] : memref<2xf32, #tpu.memory_space<smem>>
    %3 = vector.broadcast %2 : f32 to vector<8x128xf32>
    %4 = arith.mulf %1, %3 : vector<8x128xf32>
    %c1 = arith.constant 1 : index
    %c0_3 = arith.constant 0 : index
    %c0_4 = arith.constant 0 : index
    %5 = vector.load %arg1[%c1, %c0_3, %c0_4] : memref<2x8x128xf32, #tpu.memory_space<vmem>>, vector<1x8x128xf32>
    %6 = vector.shape_cast %5 : vector<1x8x128xf32> to vector<8x128xf32>
    %c1_5 = arith.constant 1 : index
    %7 = memref.load %arg2[%c1_5] : memref<2xf32, #tpu.memory_space<smem>>
    %8 = vector.broadcast %7 : f32 to vector<8x128xf32>
    %9 = arith.mulf %6, %8 : vector<8x128xf32>
    %10 = arith.mulf %4, %4 : vector<8x128xf32>
    %cst = arith.constant 1.000000e+00 : f32
    %11 = vector.broadcast %cst : f32 to vector<8x128xf32>
    %12 = arith.addf %11, %10 : vector<8x128xf32>
    %13 = math.rsqrt %12 : vector<8x128xf32>
    %cst_6 = arith.constant 1.000000e+00 : f32
    %14 = vector.broadcast %cst_6 : f32 to vector<8x128xf32>
    %15 = arith.addf %14, %13 : vector<8x128xf32>
    %cst_7 = arith.constant 5.000000e-01 : f32
    %16 = vector.broadcast %cst_7 : f32 to vector<8x128xf32>
    %17 = arith.mulf %15, %16 : vector<8x128xf32>
    %18 = math.sqrt %17 : vector<8x128xf32>
    %cst_8 = arith.constant 5.000000e-01 : f32
    %19 = vector.broadcast %cst_8 : f32 to vector<8x128xf32>
    %20 = arith.mulf %19, %4 : vector<8x128xf32>
    %21 = arith.mulf %20, %13 : vector<8x128xf32>
    %22 = arith.divf %21, %18 : vector<8x128xf32>
    %23 = arith.mulf %9, %9 : vector<8x128xf32>
    %cst_9 = arith.constant 1.000000e+00 : f32
    %24 = vector.broadcast %cst_9 : f32 to vector<8x128xf32>
    %25 = arith.addf %24, %23 : vector<8x128xf32>
    %26 = math.rsqrt %25 : vector<8x128xf32>
    %cst_10 = arith.constant 1.000000e+00 : f32
    %27 = vector.broadcast %cst_10 : f32 to vector<8x128xf32>
    %28 = arith.addf %27, %26 : vector<8x128xf32>
    %cst_11 = arith.constant 5.000000e-01 : f32
    %29 = vector.broadcast %cst_11 : f32 to vector<8x128xf32>
    %30 = arith.mulf %28, %29 : vector<8x128xf32>
    %31 = math.sqrt %30 : vector<8x128xf32>
    %cst_12 = arith.constant 5.000000e-01 : f32
    %32 = vector.broadcast %cst_12 : f32 to vector<8x128xf32>
    %33 = arith.mulf %32, %9 : vector<8x128xf32>
    %34 = arith.mulf %33, %26 : vector<8x128xf32>
    %35 = arith.divf %34, %31 : vector<8x128xf32>
    %cst_13 = arith.constant 0.000000e+00 : f32
    %36 = vector.broadcast %cst_13 : f32 to vector<8x128xf32>
    %37 = arith.mulf %18, %31 : vector<8x128xf32>
    %38 = arith.mulf %22, %35 : vector<8x128xf32>
    %cst_14 = arith.constant 0.000000e+00 : f32
    %39 = vector.broadcast %cst_14 : f32 to vector<8x128xf32>
    %40 = arith.subf %39, %38 : vector<8x128xf32>
    %41 = arith.mulf %18, %35 : vector<8x128xf32>
    %cst_15 = arith.constant 0.000000e+00 : f32
    %42 = vector.broadcast %cst_15 : f32 to vector<8x128xf32>
    %43 = arith.subf %42, %41 : vector<8x128xf32>
    %44 = arith.mulf %22, %31 : vector<8x128xf32>
    %cst_16 = arith.constant 0.000000e+00 : f32
    %45 = vector.broadcast %cst_16 : f32 to vector<8x128xf32>
    %46 = arith.subf %45, %44 : vector<8x128xf32>
    %c0_17 = arith.constant 0 : index
    %47 = memref.load %arg3[%c0_17] : memref<10xf32, #tpu.memory_space<smem>>
    %c0_18 = arith.constant 0 : index
    %48 = memref.load %arg4[%c0_18] : memref<10xf32, #tpu.memory_space<smem>>
    %49 = vector.broadcast %47 : f32 to vector<8x128xf32>
    %50 = arith.mulf %49, %37 : vector<8x128xf32>
    %51 = vector.broadcast %48 : f32 to vector<8x128xf32>
    %52 = arith.mulf %51, %36 : vector<8x128xf32>
    %53 = arith.subf %50, %52 : vector<8x128xf32>
    %54 = vector.broadcast %47 : f32 to vector<8x128xf32>
    %55 = arith.mulf %54, %36 : vector<8x128xf32>
    %56 = vector.broadcast %48 : f32 to vector<8x128xf32>
    %57 = arith.mulf %56, %46 : vector<8x128xf32>
    %58 = arith.subf %55, %57 : vector<8x128xf32>
    %59 = vector.broadcast %48 : f32 to vector<8x128xf32>
    %60 = arith.mulf %59, %37 : vector<8x128xf32>
    %61 = vector.broadcast %47 : f32 to vector<8x128xf32>
    %62 = arith.mulf %61, %36 : vector<8x128xf32>
    %63 = arith.addf %60, %62 : vector<8x128xf32>
    %64 = vector.broadcast %48 : f32 to vector<8x128xf32>
    %65 = arith.mulf %64, %36 : vector<8x128xf32>
    %66 = vector.broadcast %47 : f32 to vector<8x128xf32>
    %67 = arith.mulf %66, %46 : vector<8x128xf32>
    %68 = arith.addf %65, %67 : vector<8x128xf32>
    %69 = vector.broadcast %47 : f32 to vector<8x128xf32>
    %70 = arith.mulf %69, %36 : vector<8x128xf32>
    %71 = vector.broadcast %48 : f32 to vector<8x128xf32>
    %72 = arith.mulf %71, %40 : vector<8x128xf32>
    %73 = arith.subf %70, %72 : vector<8x128xf32>
    %74 = vector.broadcast %47 : f32 to vector<8x128xf32>
    %75 = arith.mulf %74, %43 : vector<8x128xf32>
    %76 = vector.broadcast %48 : f32 to vector<8x128xf32>
    %77 = arith.mulf %76, %36 : vector<8x128xf32>
    %78 = arith.subf %75, %77 : vector<8x128xf32>
    %79 = vector.broadcast %48 : f32 to vector<8x128xf32>
    %80 = arith.mulf %79, %36 : vector<8x128xf32>
    %81 = vector.broadcast %47 : f32 to vector<8x128xf32>
    %82 = arith.mulf %81, %40 : vector<8x128xf32>
    %83 = arith.addf %80, %82 : vector<8x128xf32>
    %84 = vector.broadcast %48 : f32 to vector<8x128xf32>
    %85 = arith.mulf %84, %43 : vector<8x128xf32>
    %86 = vector.broadcast %47 : f32 to vector<8x128xf32>
    %87 = arith.mulf %86, %36 : vector<8x128xf32>
    %88 = arith.addf %85, %87 : vector<8x128xf32>
    %c1_19 = arith.constant 1 : index
    %89 = memref.load %arg3[%c1_19] : memref<10xf32, #tpu.memory_space<smem>>
    %c1_20 = arith.constant 1 : index
    %90 = memref.load %arg4[%c1_20] : memref<10xf32, #tpu.memory_space<smem>>
    %91 = vector.broadcast %89 : f32 to vector<8x128xf32>
    %92 = arith.mulf %91, %53 : vector<8x128xf32>
    %93 = vector.broadcast %90 : f32 to vector<8x128xf32>
    %94 = arith.mulf %93, %73 : vector<8x128xf32>
    %95 = arith.subf %92, %94 : vector<8x128xf32>
    %96 = vector.broadcast %89 : f32 to vector<8x128xf32>
    %97 = arith.mulf %96, %58 : vector<8x128xf32>
    %98 = vector.broadcast %90 : f32 to vector<8x128xf32>
    %99 = arith.mulf %98, %78 : vector<8x128xf32>
    %100 = arith.subf %97, %99 : vector<8x128xf32>
    %101 = vector.broadcast %90 : f32 to vector<8x128xf32>
    %102 = arith.mulf %101, %53 : vector<8x128xf32>
    %103 = vector.broadcast %89 : f32 to vector<8x128xf32>
    %104 = arith.mulf %103, %73 : vector<8x128xf32>
    %105 = arith.addf %102, %104 : vector<8x128xf32>
    %106 = vector.broadcast %90 : f32 to vector<8x128xf32>
    %107 = arith.mulf %106, %58 : vector<8x128xf32>
    %108 = vector.broadcast %89 : f32 to vector<8x128xf32>
    %109 = arith.mulf %108, %78 : vector<8x128xf32>
    %110 = arith.addf %107, %109 : vector<8x128xf32>
    %111 = vector.broadcast %89 : f32 to vector<8x128xf32>
    %112 = arith.mulf %111, %63 : vector<8x128xf32>
    %113 = vector.broadcast %90 : f32 to vector<8x128xf32>
    %114 = arith.mulf %113, %83 : vector<8x128xf32>
    %115 = arith.subf %112, %114 : vector<8x128xf32>
    %116 = vector.broadcast %89 : f32 to vector<8x128xf32>
    %117 = arith.mulf %116, %68 : vector<8x128xf32>
    %118 = vector.broadcast %90 : f32 to vector<8x128xf32>
    %119 = arith.mulf %118, %88 : vector<8x128xf32>
    %120 = arith.subf %117, %119 : vector<8x128xf32>
    %121 = vector.broadcast %90 : f32 to vector<8x128xf32>
    %122 = arith.mulf %121, %63 : vector<8x128xf32>
    %123 = vector.broadcast %89 : f32 to vector<8x128xf32>
    %124 = arith.mulf %123, %83 : vector<8x128xf32>
    %125 = arith.addf %122, %124 : vector<8x128xf32>
    %126 = vector.broadcast %90 : f32 to vector<8x128xf32>
    %127 = arith.mulf %126, %68 : vector<8x128xf32>
    %128 = vector.broadcast %89 : f32 to vector<8x128xf32>
    %129 = arith.mulf %128, %88 : vector<8x128xf32>
    %130 = arith.addf %127, %129 : vector<8x128xf32>
    %c0_21 = arith.constant 0 : index
    %131 = memref.load %arg5[%c0_21] : memref<20xf32, #tpu.memory_space<smem>>
    %c0_22 = arith.constant 0 : index
    %132 = memref.load %arg6[%c0_22] : memref<20xf32, #tpu.memory_space<smem>>
    %133 = vector.broadcast %131 : f32 to vector<8x128xf32>
    %134 = arith.mulf %95, %133 : vector<8x128xf32>
    %135 = vector.broadcast %132 : f32 to vector<8x128xf32>
    %136 = arith.mulf %100, %135 : vector<8x128xf32>
    %137 = arith.subf %134, %136 : vector<8x128xf32>
    %138 = vector.broadcast %132 : f32 to vector<8x128xf32>
    %139 = arith.mulf %95, %138 : vector<8x128xf32>
    %140 = vector.broadcast %131 : f32 to vector<8x128xf32>
    %141 = arith.mulf %100, %140 : vector<8x128xf32>
    %142 = arith.addf %139, %141 : vector<8x128xf32>
    %c1_23 = arith.constant 1 : index
    %143 = memref.load %arg5[%c1_23] : memref<20xf32, #tpu.memory_space<smem>>
    %c1_24 = arith.constant 1 : index
    %144 = memref.load %arg6[%c1_24] : memref<20xf32, #tpu.memory_space<smem>>
    %145 = vector.broadcast %143 : f32 to vector<8x128xf32>
    %146 = arith.mulf %105, %145 : vector<8x128xf32>
    %147 = vector.broadcast %144 : f32 to vector<8x128xf32>
    %148 = arith.mulf %110, %147 : vector<8x128xf32>
    %149 = arith.subf %146, %148 : vector<8x128xf32>
    %150 = vector.broadcast %144 : f32 to vector<8x128xf32>
    %151 = arith.mulf %105, %150 : vector<8x128xf32>
    %152 = vector.broadcast %143 : f32 to vector<8x128xf32>
    %153 = arith.mulf %110, %152 : vector<8x128xf32>
    %154 = arith.addf %151, %153 : vector<8x128xf32>
    %c2 = arith.constant 2 : index
    %155 = memref.load %arg5[%c2] : memref<20xf32, #tpu.memory_space<smem>>
    %c2_25 = arith.constant 2 : index
    %156 = memref.load %arg6[%c2_25] : memref<20xf32, #tpu.memory_space<smem>>
    %157 = vector.broadcast %155 : f32 to vector<8x128xf32>
    %158 = arith.mulf %115, %157 : vector<8x128xf32>
    %159 = vector.broadcast %156 : f32 to vector<8x128xf32>
    %160 = arith.mulf %120, %159 : vector<8x128xf32>
    %161 = arith.subf %158, %160 : vector<8x128xf32>
    %162 = vector.broadcast %156 : f32 to vector<8x128xf32>
    %163 = arith.mulf %115, %162 : vector<8x128xf32>
    %164 = vector.broadcast %155 : f32 to vector<8x128xf32>
    %165 = arith.mulf %120, %164 : vector<8x128xf32>
    %166 = arith.addf %163, %165 : vector<8x128xf32>
    %c3 = arith.constant 3 : index
    %167 = memref.load %arg5[%c3] : memref<20xf32, #tpu.memory_space<smem>>
    %c3_26 = arith.constant 3 : index
    %168 = memref.load %arg6[%c3_26] : memref<20xf32, #tpu.memory_space<smem>>
    %169 = vector.broadcast %167 : f32 to vector<8x128xf32>
    %170 = arith.mulf %125, %169 : vector<8x128xf32>
    %171 = vector.broadcast %168 : f32 to vector<8x128xf32>
    %172 = arith.mulf %130, %171 : vector<8x128xf32>
    %173 = arith.subf %170, %172 : vector<8x128xf32>
    %174 = vector.broadcast %168 : f32 to vector<8x128xf32>
    %175 = arith.mulf %125, %174 : vector<8x128xf32>
    %176 = vector.broadcast %167 : f32 to vector<8x128xf32>
    %177 = arith.mulf %130, %176 : vector<8x128xf32>
    %178 = arith.addf %175, %177 : vector<8x128xf32>
    %179 = arith.mulf %18, %137 : vector<8x128xf32>
    %180 = arith.mulf %22, %166 : vector<8x128xf32>
    %181 = arith.addf %179, %180 : vector<8x128xf32>
    %182 = arith.mulf %18, %142 : vector<8x128xf32>
    %183 = arith.mulf %22, %161 : vector<8x128xf32>
    %184 = arith.subf %182, %183 : vector<8x128xf32>
    %185 = arith.mulf %22, %142 : vector<8x128xf32>
    %186 = arith.mulf %18, %161 : vector<8x128xf32>
    %187 = arith.addf %185, %186 : vector<8x128xf32>
    %cst_27 = arith.constant 0.000000e+00 : f32
    %188 = vector.broadcast %cst_27 : f32 to vector<8x128xf32>
    %189 = arith.subf %188, %22 : vector<8x128xf32>
    %190 = arith.mulf %189, %137 : vector<8x128xf32>
    %191 = arith.mulf %18, %166 : vector<8x128xf32>
    %192 = arith.addf %190, %191 : vector<8x128xf32>
    %193 = arith.mulf %18, %149 : vector<8x128xf32>
    %194 = arith.mulf %22, %178 : vector<8x128xf32>
    %195 = arith.addf %193, %194 : vector<8x128xf32>
    %196 = arith.mulf %18, %154 : vector<8x128xf32>
    %197 = arith.mulf %22, %173 : vector<8x128xf32>
    %198 = arith.subf %196, %197 : vector<8x128xf32>
    %199 = arith.mulf %22, %154 : vector<8x128xf32>
    %200 = arith.mulf %18, %173 : vector<8x128xf32>
    %201 = arith.addf %199, %200 : vector<8x128xf32>
    %cst_28 = arith.constant 0.000000e+00 : f32
    %202 = vector.broadcast %cst_28 : f32 to vector<8x128xf32>
    %203 = arith.subf %202, %22 : vector<8x128xf32>
    %204 = arith.mulf %203, %149 : vector<8x128xf32>
    %205 = arith.mulf %18, %178 : vector<8x128xf32>
    %206 = arith.addf %204, %205 : vector<8x128xf32>
    %207 = arith.mulf %31, %181 : vector<8x128xf32>
    %208 = arith.mulf %35, %198 : vector<8x128xf32>
    %209 = arith.addf %207, %208 : vector<8x128xf32>
    %210 = arith.mulf %31, %184 : vector<8x128xf32>
    %211 = arith.mulf %35, %195 : vector<8x128xf32>
    %212 = arith.subf %210, %211 : vector<8x128xf32>
    %213 = arith.mulf %35, %184 : vector<8x128xf32>
    %214 = arith.mulf %31, %195 : vector<8x128xf32>
    %215 = arith.addf %213, %214 : vector<8x128xf32>
    %cst_29 = arith.constant 0.000000e+00 : f32
    %216 = vector.broadcast %cst_29 : f32 to vector<8x128xf32>
    %217 = arith.subf %216, %35 : vector<8x128xf32>
    %218 = arith.mulf %217, %181 : vector<8x128xf32>
    %219 = arith.mulf %31, %198 : vector<8x128xf32>
    %220 = arith.addf %218, %219 : vector<8x128xf32>
    %221 = arith.mulf %31, %187 : vector<8x128xf32>
    %222 = arith.mulf %35, %206 : vector<8x128xf32>
    %223 = arith.addf %221, %222 : vector<8x128xf32>
    %224 = arith.mulf %31, %192 : vector<8x128xf32>
    %225 = arith.mulf %35, %201 : vector<8x128xf32>
    %226 = arith.subf %224, %225 : vector<8x128xf32>
    %227 = arith.mulf %35, %192 : vector<8x128xf32>
    %228 = arith.mulf %31, %201 : vector<8x128xf32>
    %229 = arith.addf %227, %228 : vector<8x128xf32>
    %cst_30 = arith.constant 0.000000e+00 : f32
    %230 = vector.broadcast %cst_30 : f32 to vector<8x128xf32>
    %231 = arith.subf %230, %35 : vector<8x128xf32>
    %232 = arith.mulf %231, %187 : vector<8x128xf32>
    %233 = arith.mulf %31, %206 : vector<8x128xf32>
    %234 = arith.addf %232, %233 : vector<8x128xf32>
    %c2_31 = arith.constant 2 : index
    %235 = memref.load %arg3[%c2_31] : memref<10xf32, #tpu.memory_space<smem>>
    %c2_32 = arith.constant 2 : index
    %236 = memref.load %arg4[%c2_32] : memref<10xf32, #tpu.memory_space<smem>>
    %237 = vector.broadcast %235 : f32 to vector<8x128xf32>
    %238 = arith.mulf %237, %209 : vector<8x128xf32>
    %239 = vector.broadcast %236 : f32 to vector<8x128xf32>
    %240 = arith.mulf %239, %223 : vector<8x128xf32>
    %241 = arith.subf %238, %240 : vector<8x128xf32>
    %242 = vector.broadcast %235 : f32 to vector<8x128xf32>
    %243 = arith.mulf %242, %212 : vector<8x128xf32>
    %244 = vector.broadcast %236 : f32 to vector<8x128xf32>
    %245 = arith.mulf %244, %226 : vector<8x128xf32>
    %246 = arith.subf %243, %245 : vector<8x128xf32>
    %247 = vector.broadcast %236 : f32 to vector<8x128xf32>
    %248 = arith.mulf %247, %209 : vector<8x128xf32>
    %249 = vector.broadcast %235 : f32 to vector<8x128xf32>
    %250 = arith.mulf %249, %223 : vector<8x128xf32>
    %251 = arith.addf %248, %250 : vector<8x128xf32>
    %252 = vector.broadcast %236 : f32 to vector<8x128xf32>
    %253 = arith.mulf %252, %212 : vector<8x128xf32>
    %254 = vector.broadcast %235 : f32 to vector<8x128xf32>
    %255 = arith.mulf %254, %226 : vector<8x128xf32>
    %256 = arith.addf %253, %255 : vector<8x128xf32>
    %257 = vector.broadcast %235 : f32 to vector<8x128xf32>
    %258 = arith.mulf %257, %215 : vector<8x128xf32>
    %259 = vector.broadcast %236 : f32 to vector<8x128xf32>
    %260 = arith.mulf %259, %229 : vector<8x128xf32>
    %261 = arith.subf %258, %260 : vector<8x128xf32>
    %262 = vector.broadcast %235 : f32 to vector<8x128xf32>
    %263 = arith.mulf %262, %220 : vector<8x128xf32>
    %264 = vector.broadcast %236 : f32 to vector<8x128xf32>
    %265 = arith.mulf %264, %234 : vector<8x128xf32>
    %266 = arith.subf %263, %265 : vector<8x128xf32>
    %267 = vector.broadcast %236 : f32 to vector<8x128xf32>
    %268 = arith.mulf %267, %215 : vector<8x128xf32>
    %269 = vector.broadcast %235 : f32 to vector<8x128xf32>
    %270 = arith.mulf %269, %229 : vector<8x128xf32>
    %271 = arith.addf %268, %270 : vector<8x128xf32>
    %272 = vector.broadcast %236 : f32 to vector<8x128xf32>
    %273 = arith.mulf %272, %220 : vector<8x128xf32>
    %274 = vector.broadcast %235 : f32 to vector<8x128xf32>
    %275 = arith.mulf %274, %234 : vector<8x128xf32>
    %276 = arith.addf %273, %275 : vector<8x128xf32>
    %c3_33 = arith.constant 3 : index
    %277 = memref.load %arg3[%c3_33] : memref<10xf32, #tpu.memory_space<smem>>
    %c3_34 = arith.constant 3 : index
    %278 = memref.load %arg4[%c3_34] : memref<10xf32, #tpu.memory_space<smem>>
    %279 = vector.broadcast %277 : f32 to vector<8x128xf32>
    %280 = arith.mulf %279, %241 : vector<8x128xf32>
    %281 = vector.broadcast %278 : f32 to vector<8x128xf32>
    %282 = arith.mulf %281, %261 : vector<8x128xf32>
    %283 = arith.subf %280, %282 : vector<8x128xf32>
    %284 = vector.broadcast %277 : f32 to vector<8x128xf32>
    %285 = arith.mulf %284, %246 : vector<8x128xf32>
    %286 = vector.broadcast %278 : f32 to vector<8x128xf32>
    %287 = arith.mulf %286, %266 : vector<8x128xf32>
    %288 = arith.subf %285, %287 : vector<8x128xf32>
    %289 = vector.broadcast %278 : f32 to vector<8x128xf32>
    %290 = arith.mulf %289, %241 : vector<8x128xf32>
    %291 = vector.broadcast %277 : f32 to vector<8x128xf32>
    %292 = arith.mulf %291, %261 : vector<8x128xf32>
    %293 = arith.addf %290, %292 : vector<8x128xf32>
    %294 = vector.broadcast %278 : f32 to vector<8x128xf32>
    %295 = arith.mulf %294, %246 : vector<8x128xf32>
    %296 = vector.broadcast %277 : f32 to vector<8x128xf32>
    %297 = arith.mulf %296, %266 : vector<8x128xf32>
    %298 = arith.addf %295, %297 : vector<8x128xf32>
    %299 = vector.broadcast %277 : f32 to vector<8x128xf32>
    %300 = arith.mulf %299, %251 : vector<8x128xf32>
    %301 = vector.broadcast %278 : f32 to vector<8x128xf32>
    %302 = arith.mulf %301, %271 : vector<8x128xf32>
    %303 = arith.subf %300, %302 : vector<8x128xf32>
    %304 = vector.broadcast %277 : f32 to vector<8x128xf32>
    %305 = arith.mulf %304, %256 : vector<8x128xf32>
    %306 = vector.broadcast %278 : f32 to vector<8x128xf32>
    %307 = arith.mulf %306, %276 : vector<8x128xf32>
    %308 = arith.subf %305, %307 : vector<8x128xf32>
    %309 = vector.broadcast %278 : f32 to vector<8x128xf32>
    %310 = arith.mulf %309, %251 : vector<8x128xf32>
    %311 = vector.broadcast %277 : f32 to vector<8x128xf32>
    %312 = arith.mulf %311, %271 : vector<8x128xf32>
    %313 = arith.addf %310, %312 : vector<8x128xf32>
    %314 = vector.broadcast %278 : f32 to vector<8x128xf32>
    %315 = arith.mulf %314, %256 : vector<8x128xf32>
    %316 = vector.broadcast %277 : f32 to vector<8x128xf32>
    %317 = arith.mulf %316, %276 : vector<8x128xf32>
    %318 = arith.addf %315, %317 : vector<8x128xf32>
    %c4 = arith.constant 4 : index
    %319 = memref.load %arg5[%c4] : memref<20xf32, #tpu.memory_space<smem>>
    %c4_35 = arith.constant 4 : index
    %320 = memref.load %arg6[%c4_35] : memref<20xf32, #tpu.memory_space<smem>>
    %321 = vector.broadcast %319 : f32 to vector<8x128xf32>
    %322 = arith.mulf %283, %321 : vector<8x128xf32>
    %323 = vector.broadcast %320 : f32 to vector<8x128xf32>
    %324 = arith.mulf %288, %323 : vector<8x128xf32>
    %325 = arith.subf %322, %324 : vector<8x128xf32>
    %326 = vector.broadcast %320 : f32 to vector<8x128xf32>
    %327 = arith.mulf %283, %326 : vector<8x128xf32>
    %328 = vector.broadcast %319 : f32 to vector<8x128xf32>
    %329 = arith.mulf %288, %328 : vector<8x128xf32>
    %330 = arith.addf %327, %329 : vector<8x128xf32>
    %c5 = arith.constant 5 : index
    %331 = memref.load %arg5[%c5] : memref<20xf32, #tpu.memory_space<smem>>
    %c5_36 = arith.constant 5 : index
    %332 = memref.load %arg6[%c5_36] : memref<20xf32, #tpu.memory_space<smem>>
    %333 = vector.broadcast %331 : f32 to vector<8x128xf32>
    %334 = arith.mulf %293, %333 : vector<8x128xf32>
    %335 = vector.broadcast %332 : f32 to vector<8x128xf32>
    %336 = arith.mulf %298, %335 : vector<8x128xf32>
    %337 = arith.subf %334, %336 : vector<8x128xf32>
    %338 = vector.broadcast %332 : f32 to vector<8x128xf32>
    %339 = arith.mulf %293, %338 : vector<8x128xf32>
    %340 = vector.broadcast %331 : f32 to vector<8x128xf32>
    %341 = arith.mulf %298, %340 : vector<8x128xf32>
    %342 = arith.addf %339, %341 : vector<8x128xf32>
    %c6 = arith.constant 6 : index
    %343 = memref.load %arg5[%c6] : memref<20xf32, #tpu.memory_space<smem>>
    %c6_37 = arith.constant 6 : index
    %344 = memref.load %arg6[%c6_37] : memref<20xf32, #tpu.memory_space<smem>>
    %345 = vector.broadcast %343 : f32 to vector<8x128xf32>
    %346 = arith.mulf %303, %345 : vector<8x128xf32>
    %347 = vector.broadcast %344 : f32 to vector<8x128xf32>
    %348 = arith.mulf %308, %347 : vector<8x128xf32>
    %349 = arith.subf %346, %348 : vector<8x128xf32>
    %350 = vector.broadcast %344 : f32 to vector<8x128xf32>
    %351 = arith.mulf %303, %350 : vector<8x128xf32>
    %352 = vector.broadcast %343 : f32 to vector<8x128xf32>
    %353 = arith.mulf %308, %352 : vector<8x128xf32>
    %354 = arith.addf %351, %353 : vector<8x128xf32>
    %c7 = arith.constant 7 : index
    %355 = memref.load %arg5[%c7] : memref<20xf32, #tpu.memory_space<smem>>
    %c7_38 = arith.constant 7 : index
    %356 = memref.load %arg6[%c7_38] : memref<20xf32, #tpu.memory_space<smem>>
    %357 = vector.broadcast %355 : f32 to vector<8x128xf32>
    %358 = arith.mulf %313, %357 : vector<8x128xf32>
    %359 = vector.broadcast %356 : f32 to vector<8x128xf32>
    %360 = arith.mulf %318, %359 : vector<8x128xf32>
    %361 = arith.subf %358, %360 : vector<8x128xf32>
    %362 = vector.broadcast %356 : f32 to vector<8x128xf32>
    %363 = arith.mulf %313, %362 : vector<8x128xf32>
    %364 = vector.broadcast %355 : f32 to vector<8x128xf32>
    %365 = arith.mulf %318, %364 : vector<8x128xf32>
    %366 = arith.addf %363, %365 : vector<8x128xf32>
    %367 = arith.mulf %18, %325 : vector<8x128xf32>
    %368 = arith.mulf %22, %354 : vector<8x128xf32>
    %369 = arith.addf %367, %368 : vector<8x128xf32>
    %370 = arith.mulf %18, %330 : vector<8x128xf32>
    %371 = arith.mulf %22, %349 : vector<8x128xf32>
    %372 = arith.subf %370, %371 : vector<8x128xf32>
    %373 = arith.mulf %22, %330 : vector<8x128xf32>
    %374 = arith.mulf %18, %349 : vector<8x128xf32>
    %375 = arith.addf %373, %374 : vector<8x128xf32>
    %cst_39 = arith.constant 0.000000e+00 : f32
    %376 = vector.broadcast %cst_39 : f32 to vector<8x128xf32>
    %377 = arith.subf %376, %22 : vector<8x128xf32>
    %378 = arith.mulf %377, %325 : vector<8x128xf32>
    %379 = arith.mulf %18, %354 : vector<8x128xf32>
    %380 = arith.addf %378, %379 : vector<8x128xf32>
    %381 = arith.mulf %18, %337 : vector<8x128xf32>
    %382 = arith.mulf %22, %366 : vector<8x128xf32>
    %383 = arith.addf %381, %382 : vector<8x128xf32>
    %384 = arith.mulf %18, %342 : vector<8x128xf32>
    %385 = arith.mulf %22, %361 : vector<8x128xf32>
    %386 = arith.subf %384, %385 : vector<8x128xf32>
    %387 = arith.mulf %22, %342 : vector<8x128xf32>
    %388 = arith.mulf %18, %361 : vector<8x128xf32>
    %389 = arith.addf %387, %388 : vector<8x128xf32>
    %cst_40 = arith.constant 0.000000e+00 : f32
    %390 = vector.broadcast %cst_40 : f32 to vector<8x128xf32>
    %391 = arith.subf %390, %22 : vector<8x128xf32>
    %392 = arith.mulf %391, %337 : vector<8x128xf32>
    %393 = arith.mulf %18, %366 : vector<8x128xf32>
    %394 = arith.addf %392, %393 : vector<8x128xf32>
    %395 = arith.mulf %31, %369 : vector<8x128xf32>
    %396 = arith.mulf %35, %386 : vector<8x128xf32>
    %397 = arith.addf %395, %396 : vector<8x128xf32>
    %398 = arith.mulf %31, %372 : vector<8x128xf32>
    %399 = arith.mulf %35, %383 : vector<8x128xf32>
    %400 = arith.subf %398, %399 : vector<8x128xf32>
    %401 = arith.mulf %35, %372 : vector<8x128xf32>
    %402 = arith.mulf %31, %383 : vector<8x128xf32>
    %403 = arith.addf %401, %402 : vector<8x128xf32>
    %cst_41 = arith.constant 0.000000e+00 : f32
    %404 = vector.broadcast %cst_41 : f32 to vector<8x128xf32>
    %405 = arith.subf %404, %35 : vector<8x128xf32>
    %406 = arith.mulf %405, %369 : vector<8x128xf32>
    %407 = arith.mulf %31, %386 : vector<8x128xf32>
    %408 = arith.addf %406, %407 : vector<8x128xf32>
    %409 = arith.mulf %31, %375 : vector<8x128xf32>
    %410 = arith.mulf %35, %394 : vector<8x128xf32>
    %411 = arith.addf %409, %410 : vector<8x128xf32>
    %412 = arith.mulf %31, %380 : vector<8x128xf32>
    %413 = arith.mulf %35, %389 : vector<8x128xf32>
    %414 = arith.subf %412, %413 : vector<8x128xf32>
    %415 = arith.mulf %35, %380 : vector<8x128xf32>
    %416 = arith.mulf %31, %389 : vector<8x128xf32>
    %417 = arith.addf %415, %416 : vector<8x128xf32>
    %cst_42 = arith.constant 0.000000e+00 : f32
    %418 = vector.broadcast %cst_42 : f32 to vector<8x128xf32>
    %419 = arith.subf %418, %35 : vector<8x128xf32>
    %420 = arith.mulf %419, %375 : vector<8x128xf32>
    %421 = arith.mulf %31, %394 : vector<8x128xf32>
    %422 = arith.addf %420, %421 : vector<8x128xf32>
    %c4_43 = arith.constant 4 : index
    %423 = memref.load %arg3[%c4_43] : memref<10xf32, #tpu.memory_space<smem>>
    %c4_44 = arith.constant 4 : index
    %424 = memref.load %arg4[%c4_44] : memref<10xf32, #tpu.memory_space<smem>>
    %425 = vector.broadcast %423 : f32 to vector<8x128xf32>
    %426 = arith.mulf %425, %397 : vector<8x128xf32>
    %427 = vector.broadcast %424 : f32 to vector<8x128xf32>
    %428 = arith.mulf %427, %411 : vector<8x128xf32>
    %429 = arith.subf %426, %428 : vector<8x128xf32>
    %430 = vector.broadcast %423 : f32 to vector<8x128xf32>
    %431 = arith.mulf %430, %400 : vector<8x128xf32>
    %432 = vector.broadcast %424 : f32 to vector<8x128xf32>
    %433 = arith.mulf %432, %414 : vector<8x128xf32>
    %434 = arith.subf %431, %433 : vector<8x128xf32>
    %435 = vector.broadcast %424 : f32 to vector<8x128xf32>
    %436 = arith.mulf %435, %397 : vector<8x128xf32>
    %437 = vector.broadcast %423 : f32 to vector<8x128xf32>
    %438 = arith.mulf %437, %411 : vector<8x128xf32>
    %439 = arith.addf %436, %438 : vector<8x128xf32>
    %440 = vector.broadcast %424 : f32 to vector<8x128xf32>
    %441 = arith.mulf %440, %400 : vector<8x128xf32>
    %442 = vector.broadcast %423 : f32 to vector<8x128xf32>
    %443 = arith.mulf %442, %414 : vector<8x128xf32>
    %444 = arith.addf %441, %443 : vector<8x128xf32>
    %445 = vector.broadcast %423 : f32 to vector<8x128xf32>
    %446 = arith.mulf %445, %403 : vector<8x128xf32>
    %447 = vector.broadcast %424 : f32 to vector<8x128xf32>
    %448 = arith.mulf %447, %417 : vector<8x128xf32>
    %449 = arith.subf %446, %448 : vector<8x128xf32>
    %450 = vector.broadcast %423 : f32 to vector<8x128xf32>
    %451 = arith.mulf %450, %408 : vector<8x128xf32>
    %452 = vector.broadcast %424 : f32 to vector<8x128xf32>
    %453 = arith.mulf %452, %422 : vector<8x128xf32>
    %454 = arith.subf %451, %453 : vector<8x128xf32>
    %455 = vector.broadcast %424 : f32 to vector<8x128xf32>
    %456 = arith.mulf %455, %403 : vector<8x128xf32>
    %457 = vector.broadcast %423 : f32 to vector<8x128xf32>
    %458 = arith.mulf %457, %417 : vector<8x128xf32>
    %459 = arith.addf %456, %458 : vector<8x128xf32>
    %460 = vector.broadcast %424 : f32 to vector<8x128xf32>
    %461 = arith.mulf %460, %408 : vector<8x128xf32>
    %462 = vector.broadcast %423 : f32 to vector<8x128xf32>
    %463 = arith.mulf %462, %422 : vector<8x128xf32>
    %464 = arith.addf %461, %463 : vector<8x128xf32>
    %c5_45 = arith.constant 5 : index
    %465 = memref.load %arg3[%c5_45] : memref<10xf32, #tpu.memory_space<smem>>
    %c5_46 = arith.constant 5 : index
    %466 = memref.load %arg4[%c5_46] : memref<10xf32, #tpu.memory_space<smem>>
    %467 = vector.broadcast %465 : f32 to vector<8x128xf32>
    %468 = arith.mulf %467, %429 : vector<8x128xf32>
    %469 = vector.broadcast %466 : f32 to vector<8x128xf32>
    %470 = arith.mulf %469, %449 : vector<8x128xf32>
    %471 = arith.subf %468, %470 : vector<8x128xf32>
    %472 = vector.broadcast %465 : f32 to vector<8x128xf32>
    %473 = arith.mulf %472, %434 : vector<8x128xf32>
    %474 = vector.broadcast %466 : f32 to vector<8x128xf32>
    %475 = arith.mulf %474, %454 : vector<8x128xf32>
    %476 = arith.subf %473, %475 : vector<8x128xf32>
    %477 = vector.broadcast %466 : f32 to vector<8x128xf32>
    %478 = arith.mulf %477, %429 : vector<8x128xf32>
    %479 = vector.broadcast %465 : f32 to vector<8x128xf32>
    %480 = arith.mulf %479, %449 : vector<8x128xf32>
    %481 = arith.addf %478, %480 : vector<8x128xf32>
    %482 = vector.broadcast %466 : f32 to vector<8x128xf32>
    %483 = arith.mulf %482, %434 : vector<8x128xf32>
    %484 = vector.broadcast %465 : f32 to vector<8x128xf32>
    %485 = arith.mulf %484, %454 : vector<8x128xf32>
    %486 = arith.addf %483, %485 : vector<8x128xf32>
    %487 = vector.broadcast %465 : f32 to vector<8x128xf32>
    %488 = arith.mulf %487, %439 : vector<8x128xf32>
    %489 = vector.broadcast %466 : f32 to vector<8x128xf32>
    %490 = arith.mulf %489, %459 : vector<8x128xf32>
    %491 = arith.subf %488, %490 : vector<8x128xf32>
    %492 = vector.broadcast %465 : f32 to vector<8x128xf32>
    %493 = arith.mulf %492, %444 : vector<8x128xf32>
    %494 = vector.broadcast %466 : f32 to vector<8x128xf32>
    %495 = arith.mulf %494, %464 : vector<8x128xf32>
    %496 = arith.subf %493, %495 : vector<8x128xf32>
    %497 = vector.broadcast %466 : f32 to vector<8x128xf32>
    %498 = arith.mulf %497, %439 : vector<8x128xf32>
    %499 = vector.broadcast %465 : f32 to vector<8x128xf32>
    %500 = arith.mulf %499, %459 : vector<8x128xf32>
    %501 = arith.addf %498, %500 : vector<8x128xf32>
    %502 = vector.broadcast %466 : f32 to vector<8x128xf32>
    %503 = arith.mulf %502, %444 : vector<8x128xf32>
    %504 = vector.broadcast %465 : f32 to vector<8x128xf32>
    %505 = arith.mulf %504, %464 : vector<8x128xf32>
    %506 = arith.addf %503, %505 : vector<8x128xf32>
    %c8 = arith.constant 8 : index
    %507 = memref.load %arg5[%c8] : memref<20xf32, #tpu.memory_space<smem>>
    %c8_47 = arith.constant 8 : index
    %508 = memref.load %arg6[%c8_47] : memref<20xf32, #tpu.memory_space<smem>>
    %509 = vector.broadcast %507 : f32 to vector<8x128xf32>
    %510 = arith.mulf %471, %509 : vector<8x128xf32>
    %511 = vector.broadcast %508 : f32 to vector<8x128xf32>
    %512 = arith.mulf %476, %511 : vector<8x128xf32>
    %513 = arith.subf %510, %512 : vector<8x128xf32>
    %514 = vector.broadcast %508 : f32 to vector<8x128xf32>
    %515 = arith.mulf %471, %514 : vector<8x128xf32>
    %516 = vector.broadcast %507 : f32 to vector<8x128xf32>
    %517 = arith.mulf %476, %516 : vector<8x128xf32>
    %518 = arith.addf %515, %517 : vector<8x128xf32>
    %c9 = arith.constant 9 : index
    %519 = memref.load %arg5[%c9] : memref<20xf32, #tpu.memory_space<smem>>
    %c9_48 = arith.constant 9 : index
    %520 = memref.load %arg6[%c9_48] : memref<20xf32, #tpu.memory_space<smem>>
    %521 = vector.broadcast %519 : f32 to vector<8x128xf32>
    %522 = arith.mulf %481, %521 : vector<8x128xf32>
    %523 = vector.broadcast %520 : f32 to vector<8x128xf32>
    %524 = arith.mulf %486, %523 : vector<8x128xf32>
    %525 = arith.subf %522, %524 : vector<8x128xf32>
    %526 = vector.broadcast %520 : f32 to vector<8x128xf32>
    %527 = arith.mulf %481, %526 : vector<8x128xf32>
    %528 = vector.broadcast %519 : f32 to vector<8x128xf32>
    %529 = arith.mulf %486, %528 : vector<8x128xf32>
    %530 = arith.addf %527, %529 : vector<8x128xf32>
    %c10 = arith.constant 10 : index
    %531 = memref.load %arg5[%c10] : memref<20xf32, #tpu.memory_space<smem>>
    %c10_49 = arith.constant 10 : index
    %532 = memref.load %arg6[%c10_49] : memref<20xf32, #tpu.memory_space<smem>>
    %533 = vector.broadcast %531 : f32 to vector<8x128xf32>
    %534 = arith.mulf %491, %533 : vector<8x128xf32>
    %535 = vector.broadcast %532 : f32 to vector<8x128xf32>
    %536 = arith.mulf %496, %535 : vector<8x128xf32>
    %537 = arith.subf %534, %536 : vector<8x128xf32>
    %538 = vector.broadcast %532 : f32 to vector<8x128xf32>
    %539 = arith.mulf %491, %538 : vector<8x128xf32>
    %540 = vector.broadcast %531 : f32 to vector<8x128xf32>
    %541 = arith.mulf %496, %540 : vector<8x128xf32>
    %542 = arith.addf %539, %541 : vector<8x128xf32>
    %c11 = arith.constant 11 : index
    %543 = memref.load %arg5[%c11] : memref<20xf32, #tpu.memory_space<smem>>
    %c11_50 = arith.constant 11 : index
    %544 = memref.load %arg6[%c11_50] : memref<20xf32, #tpu.memory_space<smem>>
    %545 = vector.broadcast %543 : f32 to vector<8x128xf32>
    %546 = arith.mulf %501, %545 : vector<8x128xf32>
    %547 = vector.broadcast %544 : f32 to vector<8x128xf32>
    %548 = arith.mulf %506, %547 : vector<8x128xf32>
    %549 = arith.subf %546, %548 : vector<8x128xf32>
    %550 = vector.broadcast %544 : f32 to vector<8x128xf32>
    %551 = arith.mulf %501, %550 : vector<8x128xf32>
    %552 = vector.broadcast %543 : f32 to vector<8x128xf32>
    %553 = arith.mulf %506, %552 : vector<8x128xf32>
    %554 = arith.addf %551, %553 : vector<8x128xf32>
    %555 = arith.mulf %18, %513 : vector<8x128xf32>
    %556 = arith.mulf %22, %542 : vector<8x128xf32>
    %557 = arith.addf %555, %556 : vector<8x128xf32>
    %558 = arith.mulf %18, %518 : vector<8x128xf32>
    %559 = arith.mulf %22, %537 : vector<8x128xf32>
    %560 = arith.subf %558, %559 : vector<8x128xf32>
    %561 = arith.mulf %22, %518 : vector<8x128xf32>
    %562 = arith.mulf %18, %537 : vector<8x128xf32>
    %563 = arith.addf %561, %562 : vector<8x128xf32>
    %cst_51 = arith.constant 0.000000e+00 : f32
    %564 = vector.broadcast %cst_51 : f32 to vector<8x128xf32>
    %565 = arith.subf %564, %22 : vector<8x128xf32>
    %566 = arith.mulf %565, %513 : vector<8x128xf32>
    %567 = arith.mulf %18, %542 : vector<8x128xf32>
    %568 = arith.addf %566, %567 : vector<8x128xf32>
    %569 = arith.mulf %18, %525 : vector<8x128xf32>
    %570 = arith.mulf %22, %554 : vector<8x128xf32>
    %571 = arith.addf %569, %570 : vector<8x128xf32>
    %572 = arith.mulf %18, %530 : vector<8x128xf32>
    %573 = arith.mulf %22, %549 : vector<8x128xf32>
    %574 = arith.subf %572, %573 : vector<8x128xf32>
    %575 = arith.mulf %22, %530 : vector<8x128xf32>
    %576 = arith.mulf %18, %549 : vector<8x128xf32>
    %577 = arith.addf %575, %576 : vector<8x128xf32>
    %cst_52 = arith.constant 0.000000e+00 : f32
    %578 = vector.broadcast %cst_52 : f32 to vector<8x128xf32>
    %579 = arith.subf %578, %22 : vector<8x128xf32>
    %580 = arith.mulf %579, %525 : vector<8x128xf32>
    %581 = arith.mulf %18, %554 : vector<8x128xf32>
    %582 = arith.addf %580, %581 : vector<8x128xf32>
    %583 = arith.mulf %31, %557 : vector<8x128xf32>
    %584 = arith.mulf %35, %574 : vector<8x128xf32>
    %585 = arith.addf %583, %584 : vector<8x128xf32>
    %586 = arith.mulf %31, %560 : vector<8x128xf32>
    %587 = arith.mulf %35, %571 : vector<8x128xf32>
    %588 = arith.subf %586, %587 : vector<8x128xf32>
    %589 = arith.mulf %35, %560 : vector<8x128xf32>
    %590 = arith.mulf %31, %571 : vector<8x128xf32>
    %591 = arith.addf %589, %590 : vector<8x128xf32>
    %cst_53 = arith.constant 0.000000e+00 : f32
    %592 = vector.broadcast %cst_53 : f32 to vector<8x128xf32>
    %593 = arith.subf %592, %35 : vector<8x128xf32>
    %594 = arith.mulf %593, %557 : vector<8x128xf32>
    %595 = arith.mulf %31, %574 : vector<8x128xf32>
    %596 = arith.addf %594, %595 : vector<8x128xf32>
    %597 = arith.mulf %31, %563 : vector<8x128xf32>
    %598 = arith.mulf %35, %582 : vector<8x128xf32>
    %599 = arith.addf %597, %598 : vector<8x128xf32>
    %600 = arith.mulf %31, %568 : vector<8x128xf32>
    %601 = arith.mulf %35, %577 : vector<8x128xf32>
    %602 = arith.subf %600, %601 : vector<8x128xf32>
    %603 = arith.mulf %35, %568 : vector<8x128xf32>
    %604 = arith.mulf %31, %577 : vector<8x128xf32>
    %605 = arith.addf %603, %604 : vector<8x128xf32>
    %cst_54 = arith.constant 0.000000e+00 : f32
    %606 = vector.broadcast %cst_54 : f32 to vector<8x128xf32>
    %607 = arith.subf %606, %35 : vector<8x128xf32>
    %608 = arith.mulf %607, %563 : vector<8x128xf32>
    %609 = arith.mulf %31, %582 : vector<8x128xf32>
    %610 = arith.addf %608, %609 : vector<8x128xf32>
    %c6_55 = arith.constant 6 : index
    %611 = memref.load %arg3[%c6_55] : memref<10xf32, #tpu.memory_space<smem>>
    %c6_56 = arith.constant 6 : index
    %612 = memref.load %arg4[%c6_56] : memref<10xf32, #tpu.memory_space<smem>>
    %613 = vector.broadcast %611 : f32 to vector<8x128xf32>
    %614 = arith.mulf %613, %585 : vector<8x128xf32>
    %615 = vector.broadcast %612 : f32 to vector<8x128xf32>
    %616 = arith.mulf %615, %599 : vector<8x128xf32>
    %617 = arith.subf %614, %616 : vector<8x128xf32>
    %618 = vector.broadcast %611 : f32 to vector<8x128xf32>
    %619 = arith.mulf %618, %588 : vector<8x128xf32>
    %620 = vector.broadcast %612 : f32 to vector<8x128xf32>
    %621 = arith.mulf %620, %602 : vector<8x128xf32>
    %622 = arith.subf %619, %621 : vector<8x128xf32>
    %623 = vector.broadcast %612 : f32 to vector<8x128xf32>
    %624 = arith.mulf %623, %585 : vector<8x128xf32>
    %625 = vector.broadcast %611 : f32 to vector<8x128xf32>
    %626 = arith.mulf %625, %599 : vector<8x128xf32>
    %627 = arith.addf %624, %626 : vector<8x128xf32>
    %628 = vector.broadcast %612 : f32 to vector<8x128xf32>
    %629 = arith.mulf %628, %588 : vector<8x128xf32>
    %630 = vector.broadcast %611 : f32 to vector<8x128xf32>
    %631 = arith.mulf %630, %602 : vector<8x128xf32>
    %632 = arith.addf %629, %631 : vector<8x128xf32>
    %633 = vector.broadcast %611 : f32 to vector<8x128xf32>
    %634 = arith.mulf %633, %591 : vector<8x128xf32>
    %635 = vector.broadcast %612 : f32 to vector<8x128xf32>
    %636 = arith.mulf %635, %605 : vector<8x128xf32>
    %637 = arith.subf %634, %636 : vector<8x128xf32>
    %638 = vector.broadcast %611 : f32 to vector<8x128xf32>
    %639 = arith.mulf %638, %596 : vector<8x128xf32>
    %640 = vector.broadcast %612 : f32 to vector<8x128xf32>
    %641 = arith.mulf %640, %610 : vector<8x128xf32>
    %642 = arith.subf %639, %641 : vector<8x128xf32>
    %643 = vector.broadcast %612 : f32 to vector<8x128xf32>
    %644 = arith.mulf %643, %591 : vector<8x128xf32>
    %645 = vector.broadcast %611 : f32 to vector<8x128xf32>
    %646 = arith.mulf %645, %605 : vector<8x128xf32>
    %647 = arith.addf %644, %646 : vector<8x128xf32>
    %648 = vector.broadcast %612 : f32 to vector<8x128xf32>
    %649 = arith.mulf %648, %596 : vector<8x128xf32>
    %650 = vector.broadcast %611 : f32 to vector<8x128xf32>
    %651 = arith.mulf %650, %610 : vector<8x128xf32>
    %652 = arith.addf %649, %651 : vector<8x128xf32>
    %c7_57 = arith.constant 7 : index
    %653 = memref.load %arg3[%c7_57] : memref<10xf32, #tpu.memory_space<smem>>
    %c7_58 = arith.constant 7 : index
    %654 = memref.load %arg4[%c7_58] : memref<10xf32, #tpu.memory_space<smem>>
    %655 = vector.broadcast %653 : f32 to vector<8x128xf32>
    %656 = arith.mulf %655, %617 : vector<8x128xf32>
    %657 = vector.broadcast %654 : f32 to vector<8x128xf32>
    %658 = arith.mulf %657, %637 : vector<8x128xf32>
    %659 = arith.subf %656, %658 : vector<8x128xf32>
    %660 = vector.broadcast %653 : f32 to vector<8x128xf32>
    %661 = arith.mulf %660, %622 : vector<8x128xf32>
    %662 = vector.broadcast %654 : f32 to vector<8x128xf32>
    %663 = arith.mulf %662, %642 : vector<8x128xf32>
    %664 = arith.subf %661, %663 : vector<8x128xf32>
    %665 = vector.broadcast %654 : f32 to vector<8x128xf32>
    %666 = arith.mulf %665, %617 : vector<8x128xf32>
    %667 = vector.broadcast %653 : f32 to vector<8x128xf32>
    %668 = arith.mulf %667, %637 : vector<8x128xf32>
    %669 = arith.addf %666, %668 : vector<8x128xf32>
    %670 = vector.broadcast %654 : f32 to vector<8x128xf32>
    %671 = arith.mulf %670, %622 : vector<8x128xf32>
    %672 = vector.broadcast %653 : f32 to vector<8x128xf32>
    %673 = arith.mulf %672, %642 : vector<8x128xf32>
    %674 = arith.addf %671, %673 : vector<8x128xf32>
    %675 = vector.broadcast %653 : f32 to vector<8x128xf32>
    %676 = arith.mulf %675, %627 : vector<8x128xf32>
    %677 = vector.broadcast %654 : f32 to vector<8x128xf32>
    %678 = arith.mulf %677, %647 : vector<8x128xf32>
    %679 = arith.subf %676, %678 : vector<8x128xf32>
    %680 = vector.broadcast %653 : f32 to vector<8x128xf32>
    %681 = arith.mulf %680, %632 : vector<8x128xf32>
    %682 = vector.broadcast %654 : f32 to vector<8x128xf32>
    %683 = arith.mulf %682, %652 : vector<8x128xf32>
    %684 = arith.subf %681, %683 : vector<8x128xf32>
    %685 = vector.broadcast %654 : f32 to vector<8x128xf32>
    %686 = arith.mulf %685, %627 : vector<8x128xf32>
    %687 = vector.broadcast %653 : f32 to vector<8x128xf32>
    %688 = arith.mulf %687, %647 : vector<8x128xf32>
    %689 = arith.addf %686, %688 : vector<8x128xf32>
    %690 = vector.broadcast %654 : f32 to vector<8x128xf32>
    %691 = arith.mulf %690, %632 : vector<8x128xf32>
    %692 = vector.broadcast %653 : f32 to vector<8x128xf32>
    %693 = arith.mulf %692, %652 : vector<8x128xf32>
    %694 = arith.addf %691, %693 : vector<8x128xf32>
    %c12 = arith.constant 12 : index
    %695 = memref.load %arg5[%c12] : memref<20xf32, #tpu.memory_space<smem>>
    %c12_59 = arith.constant 12 : index
    %696 = memref.load %arg6[%c12_59] : memref<20xf32, #tpu.memory_space<smem>>
    %697 = vector.broadcast %695 : f32 to vector<8x128xf32>
    %698 = arith.mulf %659, %697 : vector<8x128xf32>
    %699 = vector.broadcast %696 : f32 to vector<8x128xf32>
    %700 = arith.mulf %664, %699 : vector<8x128xf32>
    %701 = arith.subf %698, %700 : vector<8x128xf32>
    %702 = vector.broadcast %696 : f32 to vector<8x128xf32>
    %703 = arith.mulf %659, %702 : vector<8x128xf32>
    %704 = vector.broadcast %695 : f32 to vector<8x128xf32>
    %705 = arith.mulf %664, %704 : vector<8x128xf32>
    %706 = arith.addf %703, %705 : vector<8x128xf32>
    %c13 = arith.constant 13 : index
    %707 = memref.load %arg5[%c13] : memref<20xf32, #tpu.memory_space<smem>>
    %c13_60 = arith.constant 13 : index
    %708 = memref.load %arg6[%c13_60] : memref<20xf32, #tpu.memory_space<smem>>
    %709 = vector.broadcast %707 : f32 to vector<8x128xf32>
    %710 = arith.mulf %669, %709 : vector<8x128xf32>
    %711 = vector.broadcast %708 : f32 to vector<8x128xf32>
    %712 = arith.mulf %674, %711 : vector<8x128xf32>
    %713 = arith.subf %710, %712 : vector<8x128xf32>
    %714 = vector.broadcast %708 : f32 to vector<8x128xf32>
    %715 = arith.mulf %669, %714 : vector<8x128xf32>
    %716 = vector.broadcast %707 : f32 to vector<8x128xf32>
    %717 = arith.mulf %674, %716 : vector<8x128xf32>
    %718 = arith.addf %715, %717 : vector<8x128xf32>
    %c14 = arith.constant 14 : index
    %719 = memref.load %arg5[%c14] : memref<20xf32, #tpu.memory_space<smem>>
    %c14_61 = arith.constant 14 : index
    %720 = memref.load %arg6[%c14_61] : memref<20xf32, #tpu.memory_space<smem>>
    %721 = vector.broadcast %719 : f32 to vector<8x128xf32>
    %722 = arith.mulf %679, %721 : vector<8x128xf32>
    %723 = vector.broadcast %720 : f32 to vector<8x128xf32>
    %724 = arith.mulf %684, %723 : vector<8x128xf32>
    %725 = arith.subf %722, %724 : vector<8x128xf32>
    %726 = vector.broadcast %720 : f32 to vector<8x128xf32>
    %727 = arith.mulf %679, %726 : vector<8x128xf32>
    %728 = vector.broadcast %719 : f32 to vector<8x128xf32>
    %729 = arith.mulf %684, %728 : vector<8x128xf32>
    %730 = arith.addf %727, %729 : vector<8x128xf32>
    %c15 = arith.constant 15 : index
    %731 = memref.load %arg5[%c15] : memref<20xf32, #tpu.memory_space<smem>>
    %c15_62 = arith.constant 15 : index
    %732 = memref.load %arg6[%c15_62] : memref<20xf32, #tpu.memory_space<smem>>
    %733 = vector.broadcast %731 : f32 to vector<8x128xf32>
    %734 = arith.mulf %689, %733 : vector<8x128xf32>
    %735 = vector.broadcast %732 : f32 to vector<8x128xf32>
    %736 = arith.mulf %694, %735 : vector<8x128xf32>
    %737 = arith.subf %734, %736 : vector<8x128xf32>
    %738 = vector.broadcast %732 : f32 to vector<8x128xf32>
    %739 = arith.mulf %689, %738 : vector<8x128xf32>
    %740 = vector.broadcast %731 : f32 to vector<8x128xf32>
    %741 = arith.mulf %694, %740 : vector<8x128xf32>
    %742 = arith.addf %739, %741 : vector<8x128xf32>
    %743 = arith.mulf %18, %701 : vector<8x128xf32>
    %744 = arith.mulf %22, %730 : vector<8x128xf32>
    %745 = arith.addf %743, %744 : vector<8x128xf32>
    %746 = arith.mulf %18, %706 : vector<8x128xf32>
    %747 = arith.mulf %22, %725 : vector<8x128xf32>
    %748 = arith.subf %746, %747 : vector<8x128xf32>
    %749 = arith.mulf %22, %706 : vector<8x128xf32>
    %750 = arith.mulf %18, %725 : vector<8x128xf32>
    %751 = arith.addf %749, %750 : vector<8x128xf32>
    %cst_63 = arith.constant 0.000000e+00 : f32
    %752 = vector.broadcast %cst_63 : f32 to vector<8x128xf32>
    %753 = arith.subf %752, %22 : vector<8x128xf32>
    %754 = arith.mulf %753, %701 : vector<8x128xf32>
    %755 = arith.mulf %18, %730 : vector<8x128xf32>
    %756 = arith.addf %754, %755 : vector<8x128xf32>
    %757 = arith.mulf %18, %713 : vector<8x128xf32>
    %758 = arith.mulf %22, %742 : vector<8x128xf32>
    %759 = arith.addf %757, %758 : vector<8x128xf32>
    %760 = arith.mulf %18, %718 : vector<8x128xf32>
    %761 = arith.mulf %22, %737 : vector<8x128xf32>
    %762 = arith.subf %760, %761 : vector<8x128xf32>
    %763 = arith.mulf %22, %718 : vector<8x128xf32>
    %764 = arith.mulf %18, %737 : vector<8x128xf32>
    %765 = arith.addf %763, %764 : vector<8x128xf32>
    %cst_64 = arith.constant 0.000000e+00 : f32
    %766 = vector.broadcast %cst_64 : f32 to vector<8x128xf32>
    %767 = arith.subf %766, %22 : vector<8x128xf32>
    %768 = arith.mulf %767, %713 : vector<8x128xf32>
    %769 = arith.mulf %18, %742 : vector<8x128xf32>
    %770 = arith.addf %768, %769 : vector<8x128xf32>
    %771 = arith.mulf %31, %745 : vector<8x128xf32>
    %772 = arith.mulf %35, %762 : vector<8x128xf32>
    %773 = arith.addf %771, %772 : vector<8x128xf32>
    %774 = arith.mulf %31, %748 : vector<8x128xf32>
    %775 = arith.mulf %35, %759 : vector<8x128xf32>
    %776 = arith.subf %774, %775 : vector<8x128xf32>
    %777 = arith.mulf %35, %748 : vector<8x128xf32>
    %778 = arith.mulf %31, %759 : vector<8x128xf32>
    %779 = arith.addf %777, %778 : vector<8x128xf32>
    %cst_65 = arith.constant 0.000000e+00 : f32
    %780 = vector.broadcast %cst_65 : f32 to vector<8x128xf32>
    %781 = arith.subf %780, %35 : vector<8x128xf32>
    %782 = arith.mulf %781, %745 : vector<8x128xf32>
    %783 = arith.mulf %31, %762 : vector<8x128xf32>
    %784 = arith.addf %782, %783 : vector<8x128xf32>
    %785 = arith.mulf %31, %751 : vector<8x128xf32>
    %786 = arith.mulf %35, %770 : vector<8x128xf32>
    %787 = arith.addf %785, %786 : vector<8x128xf32>
    %788 = arith.mulf %31, %756 : vector<8x128xf32>
    %789 = arith.mulf %35, %765 : vector<8x128xf32>
    %790 = arith.subf %788, %789 : vector<8x128xf32>
    %791 = arith.mulf %35, %756 : vector<8x128xf32>
    %792 = arith.mulf %31, %765 : vector<8x128xf32>
    %793 = arith.addf %791, %792 : vector<8x128xf32>
    %cst_66 = arith.constant 0.000000e+00 : f32
    %794 = vector.broadcast %cst_66 : f32 to vector<8x128xf32>
    %795 = arith.subf %794, %35 : vector<8x128xf32>
    %796 = arith.mulf %795, %751 : vector<8x128xf32>
    %797 = arith.mulf %31, %770 : vector<8x128xf32>
    %798 = arith.addf %796, %797 : vector<8x128xf32>
    %c8_67 = arith.constant 8 : index
    %799 = memref.load %arg3[%c8_67] : memref<10xf32, #tpu.memory_space<smem>>
    %c8_68 = arith.constant 8 : index
    %800 = memref.load %arg4[%c8_68] : memref<10xf32, #tpu.memory_space<smem>>
    %801 = vector.broadcast %799 : f32 to vector<8x128xf32>
    %802 = arith.mulf %801, %773 : vector<8x128xf32>
    %803 = vector.broadcast %800 : f32 to vector<8x128xf32>
    %804 = arith.mulf %803, %787 : vector<8x128xf32>
    %805 = arith.subf %802, %804 : vector<8x128xf32>
    %806 = vector.broadcast %799 : f32 to vector<8x128xf32>
    %807 = arith.mulf %806, %776 : vector<8x128xf32>
    %808 = vector.broadcast %800 : f32 to vector<8x128xf32>
    %809 = arith.mulf %808, %790 : vector<8x128xf32>
    %810 = arith.subf %807, %809 : vector<8x128xf32>
    %811 = vector.broadcast %800 : f32 to vector<8x128xf32>
    %812 = arith.mulf %811, %773 : vector<8x128xf32>
    %813 = vector.broadcast %799 : f32 to vector<8x128xf32>
    %814 = arith.mulf %813, %787 : vector<8x128xf32>
    %815 = arith.addf %812, %814 : vector<8x128xf32>
    %816 = vector.broadcast %800 : f32 to vector<8x128xf32>
    %817 = arith.mulf %816, %776 : vector<8x128xf32>
    %818 = vector.broadcast %799 : f32 to vector<8x128xf32>
    %819 = arith.mulf %818, %790 : vector<8x128xf32>
    %820 = arith.addf %817, %819 : vector<8x128xf32>
    %821 = vector.broadcast %799 : f32 to vector<8x128xf32>
    %822 = arith.mulf %821, %779 : vector<8x128xf32>
    %823 = vector.broadcast %800 : f32 to vector<8x128xf32>
    %824 = arith.mulf %823, %793 : vector<8x128xf32>
    %825 = arith.subf %822, %824 : vector<8x128xf32>
    %826 = vector.broadcast %799 : f32 to vector<8x128xf32>
    %827 = arith.mulf %826, %784 : vector<8x128xf32>
    %828 = vector.broadcast %800 : f32 to vector<8x128xf32>
    %829 = arith.mulf %828, %798 : vector<8x128xf32>
    %830 = arith.subf %827, %829 : vector<8x128xf32>
    %831 = vector.broadcast %800 : f32 to vector<8x128xf32>
    %832 = arith.mulf %831, %779 : vector<8x128xf32>
    %833 = vector.broadcast %799 : f32 to vector<8x128xf32>
    %834 = arith.mulf %833, %793 : vector<8x128xf32>
    %835 = arith.addf %832, %834 : vector<8x128xf32>
    %836 = vector.broadcast %800 : f32 to vector<8x128xf32>
    %837 = arith.mulf %836, %784 : vector<8x128xf32>
    %838 = vector.broadcast %799 : f32 to vector<8x128xf32>
    %839 = arith.mulf %838, %798 : vector<8x128xf32>
    %840 = arith.addf %837, %839 : vector<8x128xf32>
    %c9_69 = arith.constant 9 : index
    %841 = memref.load %arg3[%c9_69] : memref<10xf32, #tpu.memory_space<smem>>
    %c9_70 = arith.constant 9 : index
    %842 = memref.load %arg4[%c9_70] : memref<10xf32, #tpu.memory_space<smem>>
    %843 = vector.broadcast %841 : f32 to vector<8x128xf32>
    %844 = arith.mulf %843, %805 : vector<8x128xf32>
    %845 = vector.broadcast %842 : f32 to vector<8x128xf32>
    %846 = arith.mulf %845, %825 : vector<8x128xf32>
    %847 = arith.subf %844, %846 : vector<8x128xf32>
    %848 = vector.broadcast %841 : f32 to vector<8x128xf32>
    %849 = arith.mulf %848, %810 : vector<8x128xf32>
    %850 = vector.broadcast %842 : f32 to vector<8x128xf32>
    %851 = arith.mulf %850, %830 : vector<8x128xf32>
    %852 = arith.subf %849, %851 : vector<8x128xf32>
    %853 = vector.broadcast %842 : f32 to vector<8x128xf32>
    %854 = arith.mulf %853, %805 : vector<8x128xf32>
    %855 = vector.broadcast %841 : f32 to vector<8x128xf32>
    %856 = arith.mulf %855, %825 : vector<8x128xf32>
    %857 = arith.addf %854, %856 : vector<8x128xf32>
    %858 = vector.broadcast %842 : f32 to vector<8x128xf32>
    %859 = arith.mulf %858, %810 : vector<8x128xf32>
    %860 = vector.broadcast %841 : f32 to vector<8x128xf32>
    %861 = arith.mulf %860, %830 : vector<8x128xf32>
    %862 = arith.addf %859, %861 : vector<8x128xf32>
    %863 = vector.broadcast %841 : f32 to vector<8x128xf32>
    %864 = arith.mulf %863, %815 : vector<8x128xf32>
    %865 = vector.broadcast %842 : f32 to vector<8x128xf32>
    %866 = arith.mulf %865, %835 : vector<8x128xf32>
    %867 = arith.subf %864, %866 : vector<8x128xf32>
    %868 = vector.broadcast %841 : f32 to vector<8x128xf32>
    %869 = arith.mulf %868, %820 : vector<8x128xf32>
    %870 = vector.broadcast %842 : f32 to vector<8x128xf32>
    %871 = arith.mulf %870, %840 : vector<8x128xf32>
    %872 = arith.subf %869, %871 : vector<8x128xf32>
    %873 = vector.broadcast %842 : f32 to vector<8x128xf32>
    %874 = arith.mulf %873, %815 : vector<8x128xf32>
    %875 = vector.broadcast %841 : f32 to vector<8x128xf32>
    %876 = arith.mulf %875, %835 : vector<8x128xf32>
    %877 = arith.addf %874, %876 : vector<8x128xf32>
    %878 = vector.broadcast %842 : f32 to vector<8x128xf32>
    %879 = arith.mulf %878, %820 : vector<8x128xf32>
    %880 = vector.broadcast %841 : f32 to vector<8x128xf32>
    %881 = arith.mulf %880, %840 : vector<8x128xf32>
    %882 = arith.addf %879, %881 : vector<8x128xf32>
    %c16 = arith.constant 16 : index
    %883 = memref.load %arg5[%c16] : memref<20xf32, #tpu.memory_space<smem>>
    %c16_71 = arith.constant 16 : index
    %884 = memref.load %arg6[%c16_71] : memref<20xf32, #tpu.memory_space<smem>>
    %885 = vector.broadcast %883 : f32 to vector<8x128xf32>
    %886 = arith.mulf %847, %885 : vector<8x128xf32>
    %887 = vector.broadcast %884 : f32 to vector<8x128xf32>
    %888 = arith.mulf %852, %887 : vector<8x128xf32>
    %889 = arith.subf %886, %888 : vector<8x128xf32>
    %890 = vector.broadcast %884 : f32 to vector<8x128xf32>
    %891 = arith.mulf %847, %890 : vector<8x128xf32>
    %892 = vector.broadcast %883 : f32 to vector<8x128xf32>
    %893 = arith.mulf %852, %892 : vector<8x128xf32>
    %894 = arith.addf %891, %893 : vector<8x128xf32>
    %c17 = arith.constant 17 : index
    %895 = memref.load %arg5[%c17] : memref<20xf32, #tpu.memory_space<smem>>
    %c17_72 = arith.constant 17 : index
    %896 = memref.load %arg6[%c17_72] : memref<20xf32, #tpu.memory_space<smem>>
    %897 = vector.broadcast %895 : f32 to vector<8x128xf32>
    %898 = arith.mulf %857, %897 : vector<8x128xf32>
    %899 = vector.broadcast %896 : f32 to vector<8x128xf32>
    %900 = arith.mulf %862, %899 : vector<8x128xf32>
    %901 = arith.subf %898, %900 : vector<8x128xf32>
    %902 = vector.broadcast %896 : f32 to vector<8x128xf32>
    %903 = arith.mulf %857, %902 : vector<8x128xf32>
    %904 = vector.broadcast %895 : f32 to vector<8x128xf32>
    %905 = arith.mulf %862, %904 : vector<8x128xf32>
    %906 = arith.addf %903, %905 : vector<8x128xf32>
    %c18 = arith.constant 18 : index
    %907 = memref.load %arg5[%c18] : memref<20xf32, #tpu.memory_space<smem>>
    %c18_73 = arith.constant 18 : index
    %908 = memref.load %arg6[%c18_73] : memref<20xf32, #tpu.memory_space<smem>>
    %909 = vector.broadcast %907 : f32 to vector<8x128xf32>
    %910 = arith.mulf %867, %909 : vector<8x128xf32>
    %911 = vector.broadcast %908 : f32 to vector<8x128xf32>
    %912 = arith.mulf %872, %911 : vector<8x128xf32>
    %913 = arith.subf %910, %912 : vector<8x128xf32>
    %914 = vector.broadcast %908 : f32 to vector<8x128xf32>
    %915 = arith.mulf %867, %914 : vector<8x128xf32>
    %916 = vector.broadcast %907 : f32 to vector<8x128xf32>
    %917 = arith.mulf %872, %916 : vector<8x128xf32>
    %918 = arith.addf %915, %917 : vector<8x128xf32>
    %c19 = arith.constant 19 : index
    %919 = memref.load %arg5[%c19] : memref<20xf32, #tpu.memory_space<smem>>
    %c19_74 = arith.constant 19 : index
    %920 = memref.load %arg6[%c19_74] : memref<20xf32, #tpu.memory_space<smem>>
    %921 = vector.broadcast %919 : f32 to vector<8x128xf32>
    %922 = arith.mulf %877, %921 : vector<8x128xf32>
    %923 = vector.broadcast %920 : f32 to vector<8x128xf32>
    %924 = arith.mulf %882, %923 : vector<8x128xf32>
    %925 = arith.subf %922, %924 : vector<8x128xf32>
    %926 = vector.broadcast %920 : f32 to vector<8x128xf32>
    %927 = arith.mulf %877, %926 : vector<8x128xf32>
    %928 = vector.broadcast %919 : f32 to vector<8x128xf32>
    %929 = arith.mulf %882, %928 : vector<8x128xf32>
    %930 = arith.addf %927, %929 : vector<8x128xf32>
    %931 = arith.mulf %889, %889 : vector<8x128xf32>
    %932 = arith.mulf %894, %894 : vector<8x128xf32>
    %933 = arith.addf %931, %932 : vector<8x128xf32>
    %934 = arith.mulf %901, %901 : vector<8x128xf32>
    %935 = arith.mulf %906, %906 : vector<8x128xf32>
    %936 = arith.addf %934, %935 : vector<8x128xf32>
    %937 = arith.mulf %913, %913 : vector<8x128xf32>
    %938 = arith.mulf %918, %918 : vector<8x128xf32>
    %939 = arith.addf %937, %938 : vector<8x128xf32>
    %940 = arith.mulf %925, %925 : vector<8x128xf32>
    %941 = arith.mulf %930, %930 : vector<8x128xf32>
    %942 = arith.addf %940, %941 : vector<8x128xf32>
    %c0_75 = arith.constant 0 : index
    %943 = memref.load %arg7[%c0_75] : memref<12xf32, #tpu.memory_space<smem>>
    %944 = vector.broadcast %943 : f32 to vector<8x128xf32>
    %945 = arith.mulf %933, %944 : vector<8x128xf32>
    %c1_76 = arith.constant 1 : index
    %946 = memref.load %arg7[%c1_76] : memref<12xf32, #tpu.memory_space<smem>>
    %947 = vector.broadcast %946 : f32 to vector<8x128xf32>
    %948 = arith.mulf %936, %947 : vector<8x128xf32>
    %949 = arith.addf %945, %948 : vector<8x128xf32>
    %c2_77 = arith.constant 2 : index
    %950 = memref.load %arg7[%c2_77] : memref<12xf32, #tpu.memory_space<smem>>
    %951 = vector.broadcast %950 : f32 to vector<8x128xf32>
    %952 = arith.mulf %939, %951 : vector<8x128xf32>
    %953 = arith.addf %949, %952 : vector<8x128xf32>
    %c3_78 = arith.constant 3 : index
    %954 = memref.load %arg7[%c3_78] : memref<12xf32, #tpu.memory_space<smem>>
    %955 = vector.broadcast %954 : f32 to vector<8x128xf32>
    %956 = arith.mulf %942, %955 : vector<8x128xf32>
    %957 = arith.addf %953, %956 : vector<8x128xf32>
    %c0_79 = arith.constant 0 : index
    %958 = memref.load %arg8[%c0_79] : memref<3xf32, #tpu.memory_space<smem>>
    %959 = vector.broadcast %958 : f32 to vector<8x128xf32>
    %960 = arith.addf %957, %959 : vector<8x128xf32>
    %c0_80 = arith.constant 0 : index
    %c0_81 = arith.constant 0 : index
    %c0_82 = arith.constant 0 : index
    %961 = vector.load %arg9[%c0_80, %c0_81, %c0_82] : memref<3x8x128xf32, #tpu.memory_space<vmem>>, vector<1x8x128xf32>
    %962 = vector.shape_cast %961 : vector<1x8x128xf32> to vector<8x128xf32>
    %963 = vector.shape_cast %960 : vector<8x128xf32> to vector<1x8x128xf32>
    tpu.vector_store %arg9[%c0_80, %c0_81, %c0_82], %963 {strides = array<i32>} : memref<3x8x128xf32, #tpu.memory_space<vmem>>, vector<1x8x128xf32>,
    %c4_83 = arith.constant 4 : index
    %964 = memref.load %arg7[%c4_83] : memref<12xf32, #tpu.memory_space<smem>>
    %965 = vector.broadcast %964 : f32 to vector<8x128xf32>
    %966 = arith.mulf %933, %965 : vector<8x128xf32>
    %c5_84 = arith.constant 5 : index
    %967 = memref.load %arg7[%c5_84] : memref<12xf32, #tpu.memory_space<smem>>
    %968 = vector.broadcast %967 : f32 to vector<8x128xf32>
    %969 = arith.mulf %936, %968 : vector<8x128xf32>
    %970 = arith.addf %966, %969 : vector<8x128xf32>
    %c6_85 = arith.constant 6 : index
    %971 = memref.load %arg7[%c6_85] : memref<12xf32, #tpu.memory_space<smem>>
    %972 = vector.broadcast %971 : f32 to vector<8x128xf32>
    %973 = arith.mulf %939, %972 : vector<8x128xf32>
    %974 = arith.addf %970, %973 : vector<8x128xf32>
    %c7_86 = arith.constant 7 : index
    %975 = memref.load %arg7[%c7_86] : memref<12xf32, #tpu.memory_space<smem>>
    %976 = vector.broadcast %975 : f32 to vector<8x128xf32>
    %977 = arith.mulf %942, %976 : vector<8x128xf32>
    %978 = arith.addf %974, %977 : vector<8x128xf32>
    %c1_87 = arith.constant 1 : index
    %979 = memref.load %arg8[%c1_87] : memref<3xf32, #tpu.memory_space<smem>>
    %980 = vector.broadcast %979 : f32 to vector<8x128xf32>
    %981 = arith.addf %978, %980 : vector<8x128xf32>
    %c1_88 = arith.constant 1 : index
    %c0_89 = arith.constant 0 : index
    %c0_90 = arith.constant 0 : index
    %982 = vector.load %arg9[%c1_88, %c0_89, %c0_90] : memref<3x8x128xf32, #tpu.memory_space<vmem>>, vector<1x8x128xf32>
    %983 = vector.shape_cast %982 : vector<1x8x128xf32> to vector<8x128xf32>
    %984 = vector.shape_cast %981 : vector<8x128xf32> to vector<1x8x128xf32>
    tpu.vector_store %arg9[%c1_88, %c0_89, %c0_90], %984 {strides = array<i32>} : memref<3x8x128xf32, #tpu.memory_space<vmem>>, vector<1x8x128xf32>,
    %c8_91 = arith.constant 8 : index
    %985 = memref.load %arg7[%c8_91] : memref<12xf32, #tpu.memory_space<smem>>
    %986 = vector.broadcast %985 : f32 to vector<8x128xf32>
    %987 = arith.mulf %933, %986 : vector<8x128xf32>
    %c9_92 = arith.constant 9 : index
    %988 = memref.load %arg7[%c9_92] : memref<12xf32, #tpu.memory_space<smem>>
    %989 = vector.broadcast %988 : f32 to vector<8x128xf32>
    %990 = arith.mulf %936, %989 : vector<8x128xf32>
    %991 = arith.addf %987, %990 : vector<8x128xf32>
    %c10_93 = arith.constant 10 : index
    %992 = memref.load %arg7[%c10_93] : memref<12xf32, #tpu.memory_space<smem>>
    %993 = vector.broadcast %992 : f32 to vector<8x128xf32>
    %994 = arith.mulf %939, %993 : vector<8x128xf32>
    %995 = arith.addf %991, %994 : vector<8x128xf32>
    %c11_94 = arith.constant 11 : index
    %996 = memref.load %arg7[%c11_94] : memref<12xf32, #tpu.memory_space<smem>>
    %997 = vector.broadcast %996 : f32 to vector<8x128xf32>
    %998 = arith.mulf %942, %997 : vector<8x128xf32>
    %999 = arith.addf %995, %998 : vector<8x128xf32>
    %c2_95 = arith.constant 2 : index
    %1000 = memref.load %arg8[%c2_95] : memref<3xf32, #tpu.memory_space<smem>>
    %1001 = vector.broadcast %1000 : f32 to vector<8x128xf32>
    %1002 = arith.addf %999, %1001 : vector<8x128xf32>
    %c2_96 = arith.constant 2 : index
    %c0_97 = arith.constant 0 : index
    %c0_98 = arith.constant 0 : index
    %1003 = vector.load %arg9[%c2_96, %c0_97, %c0_98] : memref<3x8x128xf32, #tpu.memory_space<vmem>>, vector<1x8x128xf32>
    %1004 = vector.shape_cast %1003 : vector<1x8x128xf32> to vector<8x128xf32>
    %1005 = vector.shape_cast %1002 : vector<8x128xf32> to vector<1x8x128xf32>
    tpu.vector_store %arg9[%c2_96, %c0_97, %c0_98], %1005 {strides = array<i32>} : memref<3x8x128xf32, #tpu.memory_space<vmem>>, vector<1x8x128xf32>,
    return
  }
  func.func @transform_0(%arg0: i32) -> (i32, i32, i32) {
    %c0_i32 = arith.constant 0 : i32
    %c0_i32_0 = arith.constant 0 : i32
    %c0_i32_1 = arith.constant 0 : i32
    return %c0_i32, %arg0, %c0_i32_0 : i32, i32, i32
  }
  func.func @transform_1(%arg0: i32) -> i32 {
    %c0_i32 = arith.constant 0 : i32
    %c0_i32_0 = arith.constant 0 : i32
    return %c0_i32 : i32
  }
  func.func @transform_2(%arg0: i32) -> i32 {
    %c0_i32 = arith.constant 0 : i32
    %c0_i32_0 = arith.constant 0 : i32
    return %c0_i32 : i32
  }
  func.func @transform_3(%arg0: i32) -> i32 {
    %c0_i32 = arith.constant 0 : i32
    %c0_i32_0 = arith.constant 0 : i32
    return %c0_i32 : i32
  }
  func.func @transform_4(%arg0: i32) -> i32 {
    %c0_i32 = arith.constant 0 : i32
    %c0_i32_0 = arith.constant 0 : i32
    return %c0_i32 : i32
  }
  func.func @transform_5(%arg0: i32) -> i32 {
    %c0_i32 = arith.constant 0 : i32
    %c0_i32_0 = arith.constant 0 : i32
    return %c0_i32 : i32
  }
  func.func @transform_6(%arg0: i32) -> i32 {
    %c0_i32 = arith.constant 0 : i32
    %c0_i32_0 = arith.constant 0 : i32
    return %c0_i32 : i32
  }
  func.func @transform_7(%arg0: i32) -> i32 {
    %c0_i32 = arith.constant 0 : i32
    %c0_i32_0 = arith.constant 0 : i32
    return %c0_i32 : i32
  }
  func.func @transform_8(%arg0: i32) -> (i32, i32, i32) {
    %c0_i32 = arith.constant 0 : i32
    %c0_i32_0 = arith.constant 0 : i32
    %c0_i32_1 = arith.constant 0 : i32
    return %c0_i32, %arg0, %c0_i32_0 : i32, i32, i32
  }
}

</mosaic_0001>

<llo_original>
// kernel: tpu_custom_call.1
$region0: #{tpu_custom_call.1}
  #allocation0 [shape = 'u32[]', space=smem, size = 0x4, offset = 0x4, fixed_abs, tag = 'smem constant byte address 0x4 - core index']
  #allocation1 [shape = 'u32[72,128]{1,0:T(1,128)}', space=vmem, size = 0x9000, scoped, tag = 'internal scratch']
  %s0 = inlined_call_operand.hbm [shape: f32[2,8,128], index: 0, kind: input, shape index: {}]
  %s1 = inlined_call_operand.hbm [shape: f32[2], index: 1, kind: input, shape index: {}]
  %s2 = inlined_call_operand.vmem [shape: f32[10], index: 2, kind: input, shape index: {}]
  %s3 = inlined_call_operand.vmem [shape: f32[10], index: 3, kind: input, shape index: {}]
  %s4 = inlined_call_operand.vmem [shape: f32[20], index: 4, kind: input, shape index: {}]
  %s5 = inlined_call_operand.vmem [shape: f32[20], index: 5, kind: input, shape index: {}]
  %s6 = inlined_call_operand.vmem [shape: f32[12], index: 6, kind: input, shape index: {}]
  %s7 = inlined_call_operand.vmem [shape: f32[3], index: 7, kind: input, shape index: {}]
  %s8 = inlined_call_operand.hbm [shape: f32[3,8,128], index: 8, kind: output, shape index: {}]
  %s9 = sld [smem:[#allocation0]]
  $region74: #{tpu_custom_call.1} parent=0
    _
  %s11 = ssub.s32 1, %s9
  %s12 = scalar_select 0, %s11, %s9
  $region1: #{tpu_custom_call.1} parent=0
    #allocation2 [shape = 'u8[8192]{0}', space=vmem, size = 0x2000, scoped, tag = 'input window, operand 0, single buffered']
    #allocation3 [shape = 's32[1]{0}', space=sflag, size = 0x4, scoped, tag = 'scoped memory for tpu_custom_call.1']
    #allocation4 [shape = 's32[1]{0}', space=sflag, size = 0x4, scoped, tag = 'scoped memory for tpu_custom_call.1']
    #allocation5 [shape = 's32[1]{0}', space=sflag, size = 0x4, scoped, tag = 'scoped memory for tpu_custom_call.1']
    #allocation6 [shape = 's32[1]{0}', space=sflag, size = 0x4, scoped, tag = 'scoped memory for tpu_custom_call.1']
    #allocation7 [shape = 'u8[512]{0}', space=smem, size = 0x200, scoped, tag = 'input window, operand 1, single buffered']
    #allocation8 [shape = 'u8[512]{0}', space=smem, size = 0x200, scoped, tag = 'input window, operand 2, single buffered']
    #allocation9 [shape = 'u8[512]{0}', space=smem, size = 0x200, scoped, tag = 'input window, operand 3, single buffered']
    #allocation10 [shape = 's32[1]{0}', space=sflag, size = 0x4, scoped, tag = 'scoped memory for tpu_custom_call.1']
    #allocation11 [shape = 'u8[512]{0}', space=smem, size = 0x200, scoped, tag = 'input window, operand 4, single buffered']
    #allocation12 [shape = 'u8[512]{0}', space=smem, size = 0x200, scoped, tag = 'input window, operand 5, single buffered']
    #allocation13 [shape = 's32[1]{0}', space=sflag, size = 0x4, scoped, tag = 'scoped memory for tpu_custom_call.1']
    #allocation14 [shape = 'u8[512]{0}', space=smem, size = 0x200, scoped, tag = 'input window, operand 6, single buffered']
    #allocation15 [shape = 'u8[512]{0}', space=smem, size = 0x200, scoped, tag = 'input window, operand 7, single buffered']
    #allocation16 [shape = 's32[1]{0}', space=sflag, size = 0x4, scoped, tag = 'scoped memory for tpu_custom_call.1']
    #allocation17 [shape = 'u8[12288]{0}', space=vmem, size = 0x3000, scoped, tag = 'output window, operand 0, single buffered']
    %13 = vsyncpa [#allocation3], 0
    %14 = vsyncpa [#allocation5], 0
    %15 = vsyncpa [#allocation6], 0
    %16 = vsyncpa [#allocation10], 0
    %17 = vsyncpa [#allocation13], 0
    %18 = vsyncpa [#allocation16], 0
    %19 = vsyncpa [#allocation4], 0
    // Predicated region
    $region2: #{tpu_custom_call.1} parent=1 // pred_check
      _
    $region3: #{tpu_custom_call.1} parent=1 // pred_check_branch
      %21 = sbr.rel (0) target = $region5
    $region4: #{tpu_custom_call.1} parent=1 // pred_region
      %23 = vsyncadd [#allocation3], 0
      %s24 = sshll.u32 %s0, 4
      %s25 = int_to_ptr.hbm [resolvable:$true] %s24
      %s26 = sshll.u32 [#allocation2], 4
      %s27 = int_to_ptr.vmem [resolvable:$true] %s26
      %32 = dma.hbm_to_vmem [thread:$0]  %s25, 256, %s27, [#allocation3], 128, 128, 8
    $region5: #{tpu_custom_call.1} parent=1 // pred_fallthru
      _
    // Predicated region
    $region6: #{tpu_custom_call.1} parent=1 // pred_check
      _
    $region7: #{tpu_custom_call.1} parent=1 // pred_check_branch
      %34 = sbr.rel (0) target = $region9
    $region8: #{tpu_custom_call.1} parent=1 // pred_region
      %36 = vsyncadd [#allocation5], 0
      %s38 = sshll.u32 %s1, 4
      %s39 = int_to_ptr.hbm [resolvable:$true] %s38
      %41 = dma.hbm_to_smem %s39, 16, [#allocation7], [#allocation5]
    $region9: #{tpu_custom_call.1} parent=1 // pred_fallthru
      _
    // Predicated region
    $region10: #{tpu_custom_call.1} parent=1 // pred_check
      _
    $region11: #{tpu_custom_call.1} parent=1 // pred_check_branch
      %43 = sbr.rel (0) target = $region13
    $region12: #{tpu_custom_call.1} parent=1 // pred_region
      %45 = vsyncadd [#allocation6], 0
      %s47 = sshll.u32 %s2, 4
      %s48 = int_to_ptr.vmem [resolvable:$true] %s47
      %50 = dma.vmem_to_smem %s48, 16, [#allocation8], [#allocation6]
    $region13: #{tpu_custom_call.1} parent=1 // pred_fallthru
      _
    // Predicated region
    $region14: #{tpu_custom_call.1} parent=1 // pred_check
      _
    $region15: #{tpu_custom_call.1} parent=1 // pred_check_branch
      %52 = sbr.rel (0) target = $region17
    $region16: #{tpu_custom_call.1} parent=1 // pred_region
      %54 = vsyncadd [#allocation10], 0
      %s56 = sshll.u32 %s3, 4
      %s57 = int_to_ptr.vmem [resolvable:$true] %s56
      %59 = dma.vmem_to_smem %s57, 16, [#allocation9], [#allocation10]
    $region17: #{tpu_custom_call.1} parent=1 // pred_fallthru
      _
    // Predicated region
    $region18: #{tpu_custom_call.1} parent=1 // pred_check
      _
    $region19: #{tpu_custom_call.1} parent=1 // pred_check_branch
      %61 = sbr.rel (0) target = $region21
    $region20: #{tpu_custom_call.1} parent=1 // pred_region
      %63 = vsyncadd [#allocation10], 0
      %s65 = sshll.u32 %s4, 4
      %s66 = int_to_ptr.vmem [resolvable:$true] %s65
      %68 = dma.vmem_to_smem %s66, 16, [#allocation11], [#allocation10]
    $region21: #{tpu_custom_call.1} parent=1 // pred_fallthru
      _
    // Predicated region
    $region22: #{tpu_custom_call.1} parent=1 // pred_check
      _
    $region23: #{tpu_custom_call.1} parent=1 // pred_check_branch
      %70 = sbr.rel (0) target = $region25
    $region24: #{tpu_custom_call.1} parent=1 // pred_region
      %72 = vsyncadd [#allocation13], 0
      %s74 = sshll.u32 %s5, 4
      %s75 = int_to_ptr.vmem [resolvable:$true] %s74
      %77 = dma.vmem_to_smem %s75, 16, [#allocation12], [#allocation13]
    $region25: #{tpu_custom_call.1} parent=1 // pred_fallthru
      _
    // Predicated region
    $region26: #{tpu_custom_call.1} parent=1 // pred_check
      _
    $region27: #{tpu_custom_call.1} parent=1 // pred_check_branch
      %79 = sbr.rel (0) target = $region29
    $region28: #{tpu_custom_call.1} parent=1 // pred_region
      %81 = vsyncadd [#allocation13], 0
      %s83 = sshll.u32 %s6, 4
      %s84 = int_to_ptr.vmem [resolvable:$true] %s83
      %86 = dma.vmem_to_smem %s84, 16, [#allocation14], [#allocation13]
    $region29: #{tpu_custom_call.1} parent=1 // pred_fallthru
      _
    // Predicated region
    $region30: #{tpu_custom_call.1} parent=1 // pred_check
      _
    $region31: #{tpu_custom_call.1} parent=1 // pred_check_branch
      %88 = sbr.rel (0) target = $region33
    $region32: #{tpu_custom_call.1} parent=1 // pred_region
      %90 = vsyncadd [#allocation16], 0
      %s92 = sshll.u32 %s7, 4
      %s93 = int_to_ptr.vmem [resolvable:$true] %s92
      %95 = dma.vmem_to_smem %s93, 16, [#allocation15], [#allocation16]
    $region33: #{tpu_custom_call.1} parent=1 // pred_fallthru
      _
    // Predicated region
    $region34: #{tpu_custom_call.1} parent=1 // pred_check
      _
    $region35: #{tpu_custom_call.1} parent=1 // pred_check_branch
      %97 = sbr.rel (0) target = $region37
    $region36: #{tpu_custom_call.1} parent=1 // pred_region
      %99 = dma.done [#allocation3], 256
    $region37: #{tpu_custom_call.1} parent=1 // pred_fallthru
      _
    // Predicated region
    $region38: #{tpu_custom_call.1} parent=1 // pred_check
      _
    $region39: #{tpu_custom_call.1} parent=1 // pred_check_branch
      %101 = sbr.rel (0) target = $region41
    $region40: #{tpu_custom_call.1} parent=1 // pred_region
      %103 = dma.done [#allocation5], 16
    $region41: #{tpu_custom_call.1} parent=1 // pred_fallthru
      _
    // Predicated region
    $region42: #{tpu_custom_call.1} parent=1 // pred_check
      _
    $region43: #{tpu_custom_call.1} parent=1 // pred_check_branch
      %105 = sbr.rel (0) target = $region45
    $region44: #{tpu_custom_call.1} parent=1 // pred_region
      %107 = dma.done [#allocation6], 16
    $region45: #{tpu_custom_call.1} parent=1 // pred_fallthru
      _
    // Predicated region
    $region46: #{tpu_custom_call.1} parent=1 // pred_check
      _
    $region47: #{tpu_custom_call.1} parent=1 // pred_check_branch
      %109 = sbr.rel (0) target = $region49
    $region48: #{tpu_custom_call.1} parent=1 // pred_region
      %111 = dma.done [#allocation10], 16
    $region49: #{tpu_custom_call.1} parent=1 // pred_fallthru
      _
    // Predicated region
    $region50: #{tpu_custom_call.1} parent=1 // pred_check
      _
    $region51: #{tpu_custom_call.1} parent=1 // pred_check_branch
      %113 = sbr.rel (0) target = $region53
    $region52: #{tpu_custom_call.1} parent=1 // pred_region
      %115 = dma.done [#allocation10], 16
    $region53: #{tpu_custom_call.1} parent=1 // pred_fallthru
      _
    // Predicated region
    $region54: #{tpu_custom_call.1} parent=1 // pred_check
      _
    $region55: #{tpu_custom_call.1} parent=1 // pred_check_branch
      %117 = sbr.rel (0) target = $region57
    $region56: #{tpu_custom_call.1} parent=1 // pred_region
      %119 = dma.done [#allocation13], 16
    $region57: #{tpu_custom_call.1} parent=1 // pred_fallthru
      _
    // Predicated region
    $region58: #{tpu_custom_call.1} parent=1 // pred_check
      _
    $region59: #{tpu_custom_call.1} parent=1 // pred_check_branch
      %121 = sbr.rel (0) target = $region61
    $region60: #{tpu_custom_call.1} parent=1 // pred_region
      %123 = dma.done [#allocation13], 16
    $region61: #{tpu_custom_call.1} parent=1 // pred_fallthru
      _
    // Predicated region
    $region62: #{tpu_custom_call.1} parent=1 // pred_check
      _
    $region63: #{tpu_custom_call.1} parent=1 // pred_check_branch
      %125 = sbr.rel (0) target = $region65
    $region64: #{tpu_custom_call.1} parent=1 // pred_region
      %127 = dma.done [#allocation16], 16
    $region65: #{tpu_custom_call.1} parent=1 // pred_fallthru
      _
    %128 = sfence
    %v129 = vld [vmem:[#allocation2] sm:$0xff]
    %s130 = sld [smem:[#allocation7]]
    %v131 = vstv %s130
    %v132 = vmul.f32 %v129, %v131
    %s133 = scalar_lea.vmem [#allocation2], 8
    %v134 = vld [vmem:[%s133] sm:$0xff]
    %s135 = sld [smem:[#allocation7 + $0x1]]
    %v136 = vstv %s135
    %v137 = vmul.f32 %v134, %v136
    %v138 = vmul.f32 %v132, %v132
    %v139 = vadd.f32 %v138, 1.0
    %v140 = vrsqrt.pop %v139
    %v141 = vmul.f32 %v140, %v139
    %v142 = vmul.f32 %v141, %v140
    %v143 = vmul.f32 0.5, %v142
    %v144 = vsub.f32 1.5, %v143
    %v145 = vmul.f32 %v140, %v144
    %vm146 = vweird.f32 %v139
    %vm147 = vweird.f32 %v140
    %vm148 = vmor %vm146, %vm147
    %v149 = vsel %vm148, %v140, %v145
    %v150 = vadd.f32 %v149, 1.0
    %v151 = vmul.f32 %v150, 0.5
    %v152 = vrsqrt.pop %v151
    %v153 = vmul.f32 %v152, %v151
    %v154 = vmul.f32 %v153, %v152
    %v155 = vmul.f32 0.5, %v154
    %v156 = vsub.f32 1.5, %v155
    %v157 = vmul.f32 %v152, %v156
    %v158 = vmul.f32 %v151, %v157
    %vm159 = vcmp.eq.f32.partialorder %v151, inf
    %v160 = vsel %vm159, %v151, %v158
    %vm161 = vcmp.eq.f32.partialorder %v151, 0.0
    %v162 = vand.u32 %v151, 2147483648
    %v163 = vsel %vm161, %v162, %v160
    %v164 = vmul.f32 %v132, 0.5
    %v165 = vmul.f32 %v164, %v149
    %v166 = vrcp.pop %v163
    %v167 = vmul.f32 %v163, %v166
    %v168 = vsub.f32 1.0, %v167
    %v169 = vmul.f32 %v166, %v168
    %v170 = vadd.f32 %v166, %v169
    %vm171 = vweird.f32 %v163
    %vm172 = vweird.f32 %v166
    %vm173 = vmor %vm171, %vm172
    %v174 = vsel %vm173, %v166, %v170
    %v175 = vand.u32 2147483647, %v163
    %vm176 = vcmp.eq.f32.partialorder %v175, 8.507059e+37
    %v177 = vand.u32 %v163, 2147483648
    %v178 = vor.u32 1.1754944e-38, %v177
    %v179 = vsel %vm176, %v178, %v174
    %v180 = vmul.f32 %v165, %v179
    %v181 = vmul.f32 %v137, %v137
    %v182 = vadd.f32 %v181, 1.0
    %v183 = vrsqrt.pop %v182
    %v184 = vmul.f32 %v183, %v182
    %v185 = vmul.f32 %v184, %v183
    %v186 = vmul.f32 0.5, %v185
    %v187 = vsub.f32 1.5, %v186
    %v188 = vmul.f32 %v183, %v187
    %vm189 = vweird.f32 %v182
    %vm190 = vweird.f32 %v183
    %vm191 = vmor %vm189, %vm190
    %v192 = vsel %vm191, %v183, %v188
    %v193 = vadd.f32 %v192, 1.0
    %v194 = vmul.f32 %v193, 0.5
    %v195 = vrsqrt.pop %v194
    %v196 = vmul.f32 %v195, %v194
    %v197 = vmul.f32 %v196, %v195
    %v198 = vmul.f32 0.5, %v197
    %v199 = vsub.f32 1.5, %v198
    %v200 = vmul.f32 %v195, %v199
    %v201 = vmul.f32 %v194, %v200
    %vm202 = vcmp.eq.f32.partialorder %v194, inf
    %v203 = vsel %vm202, %v194, %v201
    %vm204 = vcmp.eq.f32.partialorder %v194, 0.0
    %v205 = vand.u32 %v194, 2147483648
    %v206 = vsel %vm204, %v205, %v203
    %v207 = vmul.f32 %v137, 0.5
    %v208 = vmul.f32 %v207, %v192
    %v209 = vrcp.pop %v206
    %v210 = vmul.f32 %v206, %v209
    %v211 = vsub.f32 1.0, %v210
    %v212 = vmul.f32 %v209, %v211
    %v213 = vadd.f32 %v209, %v212
    %vm214 = vweird.f32 %v206
    %vm215 = vweird.f32 %v209
    %vm216 = vmor %vm214, %vm215
    %v217 = vsel %vm216, %v209, %v213
    %v218 = vand.u32 2147483647, %v206
    %vm219 = vcmp.eq.f32.partialorder %v218, 8.507059e+37
    %v220 = vand.u32 %v206, 2147483648
    %v221 = vor.u32 1.1754944e-38, %v220
    %v222 = vsel %vm219, %v221, %v217
    %v223 = vmul.f32 %v208, %v222
    %v224 = vmul.f32 %v163, %v206
    %v225 = vmul.f32 %v180, %v223
    %v226 = vsub.f32 0.0, %v225
    %v227 = vmul.f32 %v163, %v223
    %v228 = vsub.f32 0.0, %v227
    %v229 = vmul.f32 %v180, %v206
    %v230 = vsub.f32 0.0, %v229
    %s231 = sld [smem:[#allocation8]]
    %s232 = sld [smem:[#allocation9]]
    %v233 = vstv %s231
    %v234 = vmul.f32 %v233, %v224
    %v235 = vstv %s232
    %v236 = vmul.f32 %v235, 0.0
    %v237 = vsub.f32 %v234, %v236
    %v238 = vmul.f32 %v233, 0.0
    %v239 = vmul.f32 %v235, %v230
    %v240 = vsub.f32 %v238, %v239
    %v241 = vmul.f32 %v235, %v224
    %v242 = vadd.f32 %v241, %v238
    %v243 = vmul.f32 %v233, %v230
    %v244 = vadd.f32 %v236, %v243
    %v245 = vmul.f32 %v235, %v226
    %v246 = vsub.f32 %v238, %v245
    %v247 = vmul.f32 %v233, %v228
    %v248 = vsub.f32 %v247, %v236
    %v249 = vmul.f32 %v233, %v226
    %v250 = vadd.f32 %v236, %v249
    %v251 = vmul.f32 %v235, %v228
    %v252 = vadd.f32 %v251, %v238
    %s253 = sld [smem:[#allocation8 + $0x1]]
    %s254 = sld [smem:[#allocation9 + $0x1]]
    %v255 = vstv %s253
    %v256 = vmul.f32 %v255, %v237
    %v257 = vstv %s254
    %v258 = vmul.f32 %v257, %v246
    %v259 = vsub.f32 %v256, %v258
    %v260 = vmul.f32 %v255, %v240
    %v261 = vmul.f32 %v257, %v248
    %v262 = vsub.f32 %v260, %v261
    %v263 = vmul.f32 %v257, %v237
    %v264 = vmul.f32 %v255, %v246
    %v265 = vadd.f32 %v263, %v264
    %v266 = vmul.f32 %v257, %v240
    %v267 = vmul.f32 %v255, %v248
    %v268 = vadd.f32 %v266, %v267
    %v269 = vmul.f32 %v255, %v242
    %v270 = vmul.f32 %v257, %v250
    %v271 = vsub.f32 %v269, %v270
    %v272 = vmul.f32 %v255, %v244
    %v273 = vmul.f32 %v257, %v252
    %v274 = vsub.f32 %v272, %v273
    %v275 = vmul.f32 %v257, %v242
    %v276 = vmul.f32 %v255, %v250
    %v277 = vadd.f32 %v275, %v276
    %v278 = vmul.f32 %v257, %v244
    %v279 = vmul.f32 %v255, %v252
    %v280 = vadd.f32 %v278, %v279
    %s281 = sld [smem:[#allocation11]]
    %s282 = sld [smem:[#allocation12]]
    %v283 = vstv %s281
    %v284 = vmul.f32 %v259, %v283
    %v285 = vstv %s282
    %v286 = vmul.f32 %v262, %v285
    %v287 = vsub.f32 %v284, %v286
    %v288 = vmul.f32 %v259, %v285
    %v289 = vmul.f32 %v262, %v283
    %v290 = vadd.f32 %v288, %v289
    %s291 = sld [smem:[#allocation11 + $0x1]]
    %s292 = sld [smem:[#allocation12 + $0x1]]
    %v293 = vstv %s291
    %v294 = vmul.f32 %v265, %v293
    %v295 = vstv %s292
    %v296 = vmul.f32 %v268, %v295
    %v297 = vsub.f32 %v294, %v296
    %v298 = vmul.f32 %v265, %v295
    %v299 = vmul.f32 %v268, %v293
    %v300 = vadd.f32 %v298, %v299
    %s301 = sld [smem:[#allocation11 + $0x2]]
    %s302 = sld [smem:[#allocation12 + $0x2]]
    %v303 = vstv %s301
    %v304 = vmul.f32 %v271, %v303
    %v305 = vstv %s302
    %v306 = vmul.f32 %v274, %v305
    %v307 = vsub.f32 %v304, %v306
    %v308 = vmul.f32 %v271, %v305
    %v309 = vmul.f32 %v274, %v303
    %v310 = vadd.f32 %v308, %v309
    %s311 = sld [smem:[#allocation11 + $0x3]]
    %s312 = sld [smem:[#allocation12 + $0x3]]
    %v313 = vstv %s311
    %v314 = vmul.f32 %v277, %v313
    %v315 = vstv %s312
    %v316 = vmul.f32 %v280, %v315
    %v317 = vsub.f32 %v314, %v316
    %v318 = vmul.f32 %v277, %v315
    %v319 = vmul.f32 %v280, %v313
    %v320 = vadd.f32 %v318, %v319
    %v321 = vmul.f32 %v163, %v287
    %v322 = vmul.f32 %v180, %v310
    %v323 = vadd.f32 %v321, %v322
    %v324 = vmul.f32 %v163, %v290
    %v325 = vmul.f32 %v180, %v307
    %v326 = vsub.f32 %v324, %v325
    %v327 = vmul.f32 %v180, %v290
    %v328 = vmul.f32 %v163, %v307
    %v329 = vadd.f32 %v327, %v328
    %v330 = vsub.f32 0.0, %v180
    %v331 = vmul.f32 %v330, %v287
    %v332 = vmul.f32 %v163, %v310
    %v333 = vadd.f32 %v331, %v332
    %v334 = vmul.f32 %v163, %v297
    %v335 = vmul.f32 %v180, %v320
    %v336 = vadd.f32 %v334, %v335
    %v337 = vmul.f32 %v163, %v300
    %v338 = vmul.f32 %v180, %v317
    %v339 = vsub.f32 %v337, %v338
    %v340 = vmul.f32 %v180, %v300
    %v341 = vmul.f32 %v163, %v317
    %v342 = vadd.f32 %v340, %v341
    %v343 = vmul.f32 %v330, %v297
    %v344 = vmul.f32 %v163, %v320
    %v345 = vadd.f32 %v343, %v344
    %v346 = vmul.f32 %v206, %v323
    %v347 = vmul.f32 %v223, %v339
    %v348 = vadd.f32 %v346, %v347
    %v349 = vmul.f32 %v206, %v326
    %v350 = vmul.f32 %v223, %v336
    %v351 = vsub.f32 %v349, %v350
    %v352 = vmul.f32 %v223, %v326
    %v353 = vmul.f32 %v206, %v336
    %v354 = vadd.f32 %v352, %v353
    %v355 = vsub.f32 0.0, %v223
    %v356 = vmul.f32 %v355, %v323
    %v357 = vmul.f32 %v206, %v339
    %v358 = vadd.f32 %v356, %v357
    %v359 = vmul.f32 %v206, %v329
    %v360 = vmul.f32 %v223, %v345
    %v361 = vadd.f32 %v359, %v360
    %v362 = vmul.f32 %v206, %v333
    %v363 = vmul.f32 %v223, %v342
    %v364 = vsub.f32 %v362, %v363
    %v365 = vmul.f32 %v223, %v333
    %v366 = vmul.f32 %v206, %v342
    %v367 = vadd.f32 %v365, %v366
    %v368 = vmul.f32 %v355, %v329
    %v369 = vmul.f32 %v206, %v345
    %v370 = vadd.f32 %v368, %v369
    %s371 = sld [smem:[#allocation8 + $0x2]]
    %s372 = sld [smem:[#allocation9 + $0x2]]
    %v373 = vstv %s371
    %v374 = vmul.f32 %v373, %v348
    %v375 = vstv %s372
    %v376 = vmul.f32 %v375, %v361
    %v377 = vsub.f32 %v374, %v376
    %v378 = vmul.f32 %v373, %v351
    %v379 = vmul.f32 %v375, %v364
    %v380 = vsub.f32 %v378, %v379
    %v381 = vmul.f32 %v375, %v348
    %v382 = vmul.f32 %v373, %v361
    %v383 = vadd.f32 %v381, %v382
    %v384 = vmul.f32 %v375, %v351
    %v385 = vmul.f32 %v373, %v364
    %v386 = vadd.f32 %v384, %v385
    %v387 = vmul.f32 %v373, %v354
    %v388 = vmul.f32 %v375, %v367
    %v389 = vsub.f32 %v387, %v388
    %v390 = vmul.f32 %v373, %v358
    %v391 = vmul.f32 %v375, %v370
    %v392 = vsub.f32 %v390, %v391
    %v393 = vmul.f32 %v375, %v354
    %v394 = vmul.f32 %v373, %v367
    %v395 = vadd.f32 %v393, %v394
    %v396 = vmul.f32 %v375, %v358
    %v397 = vmul.f32 %v373, %v370
    %v398 = vadd.f32 %v396, %v397
    %s399 = sld [smem:[#allocation8 + $0x3]]
    %s400 = sld [smem:[#allocation9 + $0x3]]
    %v401 = vstv %s399
    %v402 = vmul.f32 %v401, %v377
    %v403 = vstv %s400
    %v404 = vmul.f32 %v403, %v389
    %v405 = vsub.f32 %v402, %v404
    %v406 = vmul.f32 %v401, %v380
    %v407 = vmul.f32 %v403, %v392
    %v408 = vsub.f32 %v406, %v407
    %v409 = vmul.f32 %v403, %v377
    %v410 = vmul.f32 %v401, %v389
    %v411 = vadd.f32 %v409, %v410
    %v412 = vmul.f32 %v403, %v380
    %v413 = vmul.f32 %v401, %v392
    %v414 = vadd.f32 %v412, %v413
    %v415 = vmul.f32 %v401, %v383
    %v416 = vmul.f32 %v403, %v395
    %v417 = vsub.f32 %v415, %v416
    %v418 = vmul.f32 %v401, %v386
    %v419 = vmul.f32 %v403, %v398
    %v420 = vsub.f32 %v418, %v419
    %v421 = vmul.f32 %v403, %v383
    %v422 = vmul.f32 %v401, %v395
    %v423 = vadd.f32 %v421, %v422
    %v424 = vmul.f32 %v403, %v386
    %v425 = vmul.f32 %v401, %v398
    %v426 = vadd.f32 %v424, %v425
    %s427 = sld [smem:[#allocation11 + $0x4]]
    %s428 = sld [smem:[#allocation12 + $0x4]]
    %v429 = vstv %s427
    %v430 = vmul.f32 %v405, %v429
    %v431 = vstv %s428
    %v432 = vmul.f32 %v408, %v431
    %v433 = vsub.f32 %v430, %v432
    %v434 = vmul.f32 %v405, %v431
    %v435 = vmul.f32 %v408, %v429
    %v436 = vadd.f32 %v434, %v435
    %s437 = sld [smem:[#allocation11 + $0x5]]
    %s438 = sld [smem:[#allocation12 + $0x5]]
    %v439 = vstv %s437
    %v440 = vmul.f32 %v411, %v439
    %v441 = vstv %s438
    %v442 = vmul.f32 %v414, %v441
    %v443 = vsub.f32 %v440, %v442
    %v444 = vmul.f32 %v411, %v441
    %v445 = vmul.f32 %v414, %v439
    %v446 = vadd.f32 %v444, %v445
    %s447 = sld [smem:[#allocation11 + $0x6]]
    %s448 = sld [smem:[#allocation12 + $0x6]]
    %v449 = vstv %s447
    %v450 = vmul.f32 %v417, %v449
    %v451 = vstv %s448
    %v452 = vmul.f32 %v420, %v451
    %v453 = vsub.f32 %v450, %v452
    %v454 = vmul.f32 %v417, %v451
    %v455 = vmul.f32 %v420, %v449
    %v456 = vadd.f32 %v454, %v455
    %s457 = sld [smem:[#allocation11 + $0x7]]
    %s458 = sld [smem:[#allocation12 + $0x7]]
    %v459 = vstv %s457
    %v460 = vmul.f32 %v423, %v459
    %v461 = vstv %s458
    %v462 = vmul.f32 %v426, %v461
    %v463 = vsub.f32 %v460, %v462
    %v464 = vmul.f32 %v423, %v461
    %v465 = vmul.f32 %v426, %v459
    %v466 = vadd.f32 %v464, %v465
    %v467 = vmul.f32 %v163, %v433
    %v468 = vmul.f32 %v180, %v456
    %v469 = vadd.f32 %v467, %v468
    %v470 = vmul.f32 %v163, %v436
    %v471 = vmul.f32 %v180, %v453
    %v472 = vsub.f32 %v470, %v471
    %v473 = vmul.f32 %v180, %v436
    %v474 = vmul.f32 %v163, %v453
    %v475 = vadd.f32 %v473, %v474
    %v476 = vmul.f32 %v330, %v433
    %v477 = vmul.f32 %v163, %v456
    %v478 = vadd.f32 %v476, %v477
    %v479 = vmul.f32 %v163, %v443
    %v480 = vmul.f32 %v180, %v466
    %v481 = vadd.f32 %v479, %v480
    %v482 = vmul.f32 %v163, %v446
    %v483 = vmul.f32 %v180, %v463
    %v484 = vsub.f32 %v482, %v483
    %v485 = vmul.f32 %v180, %v446
    %v486 = vmul.f32 %v163, %v463
    %v487 = vadd.f32 %v485, %v486
    %v488 = vmul.f32 %v330, %v443
    %v489 = vmul.f32 %v163, %v466
    %v490 = vadd.f32 %v488, %v489
    %v491 = vmul.f32 %v206, %v469
    %v492 = vmul.f32 %v223, %v484
    %v493 = vadd.f32 %v491, %v492
    %v494 = vmul.f32 %v206, %v472
    %v495 = vmul.f32 %v223, %v481
    %v496 = vsub.f32 %v494, %v495
    %v497 = vmul.f32 %v223, %v472
    %v498 = vmul.f32 %v206, %v481
    %v499 = vadd.f32 %v497, %v498
    %v500 = vmul.f32 %v355, %v469
    %v501 = vmul.f32 %v206, %v484
    %v502 = vadd.f32 %v500, %v501
    %v503 = vmul.f32 %v206, %v475
    %v504 = vmul.f32 %v223, %v490
    %v505 = vadd.f32 %v503, %v504
    %v506 = vmul.f32 %v206, %v478
    %v507 = vmul.f32 %v223, %v487
    %v508 = vsub.f32 %v506, %v507
    %v509 = vmul.f32 %v223, %v478
    %v510 = vmul.f32 %v206, %v487
    %v511 = vadd.f32 %v509, %v510
    %v512 = vmul.f32 %v355, %v475
    %v513 = vmul.f32 %v206, %v490
    %v514 = vadd.f32 %v512, %v513
    %s515 = sld [smem:[#allocation8 + $0x4]]
    %s516 = sld [smem:[#allocation9 + $0x4]]
    %v517 = vstv %s515
    %v518 = vmul.f32 %v517, %v493
    %v519 = vstv %s516
    %v520 = vmul.f32 %v519, %v505
    %v521 = vsub.f32 %v518, %v520
    %v522 = vmul.f32 %v517, %v496
    %v523 = vmul.f32 %v519, %v508
    %v524 = vsub.f32 %v522, %v523
    %v525 = vmul.f32 %v519, %v493
    %v526 = vmul.f32 %v517, %v505
    %v527 = vadd.f32 %v525, %v526
    %v528 = vmul.f32 %v519, %v496
    %v529 = vmul.f32 %v517, %v508
    %v530 = vadd.f32 %v528, %v529
    %v531 = vmul.f32 %v517, %v499
    %v532 = vmul.f32 %v519, %v511
    %v533 = vsub.f32 %v531, %v532
    %v534 = vmul.f32 %v517, %v502
    %v535 = vmul.f32 %v519, %v514
    %v536 = vsub.f32 %v534, %v535
    %v537 = vmul.f32 %v519, %v499
    %v538 = vmul.f32 %v517, %v511
    %v539 = vadd.f32 %v537, %v538
    %v540 = vmul.f32 %v519, %v502
    %v541 = vmul.f32 %v517, %v514
    %v542 = vadd.f32 %v540, %v541
    %s543 = sld [smem:[#allocation8 + $0x5]]
    %s544 = sld [smem:[#allocation9 + $0x5]]
    %v545 = vstv %s543
    %v546 = vmul.f32 %v545, %v521
    %v547 = vstv %s544
    %v548 = vmul.f32 %v547, %v533
    %v549 = vsub.f32 %v546, %v548
    %v550 = vmul.f32 %v545, %v524
    %v551 = vmul.f32 %v547, %v536
    %v552 = vsub.f32 %v550, %v551
    %v553 = vmul.f32 %v547, %v521
    %v554 = vmul.f32 %v545, %v533
    %v555 = vadd.f32 %v553, %v554
    %v556 = vmul.f32 %v547, %v524
    %v557 = vmul.f32 %v545, %v536
    %v558 = vadd.f32 %v556, %v557
    %v559 = vmul.f32 %v545, %v527
    %v560 = vmul.f32 %v547, %v539
    %v561 = vsub.f32 %v559, %v560
    %v562 = vmul.f32 %v545, %v530
    %v563 = vmul.f32 %v547, %v542
    %v564 = vsub.f32 %v562, %v563
    %v565 = vmul.f32 %v547, %v527
    %v566 = vmul.f32 %v545, %v539
    %v567 = vadd.f32 %v565, %v566
    %v568 = vmul.f32 %v547, %v530
    %v569 = vmul.f32 %v545, %v542
    %v570 = vadd.f32 %v568, %v569
    %s571 = sld [smem:[#allocation11 + $0x8]]
    %s572 = sld [smem:[#allocation12 + $0x8]]
    %v573 = vstv %s571
    %v574 = vmul.f32 %v549, %v573
    %v575 = vstv %s572
    %v576 = vmul.f32 %v552, %v575
    %v577 = vsub.f32 %v574, %v576
    %v578 = vmul.f32 %v549, %v575
    %v579 = vmul.f32 %v552, %v573
    %v580 = vadd.f32 %v578, %v579
    %s581 = sld [smem:[#allocation11 + $0x9]]
    %s582 = sld [smem:[#allocation12 + $0x9]]
    %v583 = vstv %s581
    %v584 = vmul.f32 %v555, %v583
    %v585 = vstv %s582
    %v586 = vmul.f32 %v558, %v585
    %v587 = vsub.f32 %v584, %v586
    %v588 = vmul.f32 %v555, %v585
    %v589 = vmul.f32 %v558, %v583
    %v590 = vadd.f32 %v588, %v589
    %s591 = sld [smem:[#allocation11 + $0xa]]
    %s592 = sld [smem:[#allocation12 + $0xa]]
    %v593 = vstv %s591
    %v594 = vmul.f32 %v561, %v593
    %v595 = vstv %s592
    %v596 = vmul.f32 %v564, %v595
    %v597 = vsub.f32 %v594, %v596
    %v598 = vmul.f32 %v561, %v595
    %v599 = vmul.f32 %v564, %v593
    %v600 = vadd.f32 %v598, %v599
    %s601 = sld [smem:[#allocation11 + $0xb]]
    %s602 = sld [smem:[#allocation12 + $0xb]]
    %v603 = vstv %s601
    %v604 = vmul.f32 %v567, %v603
    %v605 = vstv %s602
    %v606 = vmul.f32 %v570, %v605
    %v607 = vsub.f32 %v604, %v606
    %v608 = vmul.f32 %v567, %v605
    %v609 = vmul.f32 %v570, %v603
    %v610 = vadd.f32 %v608, %v609
    %v611 = vmul.f32 %v163, %v577
    %v612 = vmul.f32 %v180, %v600
    %v613 = vadd.f32 %v611, %v612
    %v614 = vmul.f32 %v163, %v580
    %v615 = vmul.f32 %v180, %v597
    %v616 = vsub.f32 %v614, %v615
    %v617 = vmul.f32 %v180, %v580
    %v618 = vmul.f32 %v163, %v597
    %v619 = vadd.f32 %v617, %v618
    %v620 = vmul.f32 %v330, %v577
    %v621 = vmul.f32 %v163, %v600
    %v622 = vadd.f32 %v620, %v621
    %v623 = vmul.f32 %v163, %v587
    %v624 = vmul.f32 %v180, %v610
    %v625 = vadd.f32 %v623, %v624
    %v626 = vmul.f32 %v163, %v590
    %v627 = vmul.f32 %v180, %v607
    %v628 = vsub.f32 %v626, %v627
    %v629 = vmul.f32 %v180, %v590
    %v630 = vmul.f32 %v163, %v607
    %v631 = vadd.f32 %v629, %v630
    %v632 = vmul.f32 %v330, %v587
    %v633 = vmul.f32 %v163, %v610
    %v634 = vadd.f32 %v632, %v633
    %v635 = vmul.f32 %v206, %v613
    %v636 = vmul.f32 %v223, %v628
    %v637 = vadd.f32 %v635, %v636
    %v638 = vmul.f32 %v206, %v616
    %v639 = vmul.f32 %v223, %v625
    %v640 = vsub.f32 %v638, %v639
    %v641 = vmul.f32 %v223, %v616
    %v642 = vmul.f32 %v206, %v625
    %v643 = vadd.f32 %v641, %v642
    %v644 = vmul.f32 %v355, %v613
    %v645 = vmul.f32 %v206, %v628
    %v646 = vadd.f32 %v644, %v645
    %v647 = vmul.f32 %v206, %v619
    %v648 = vmul.f32 %v223, %v634
    %v649 = vadd.f32 %v647, %v648
    %v650 = vmul.f32 %v206, %v622
    %v651 = vmul.f32 %v223, %v631
    %v652 = vsub.f32 %v650, %v651
    %v653 = vmul.f32 %v223, %v622
    %v654 = vmul.f32 %v206, %v631
    %v655 = vadd.f32 %v653, %v654
    %v656 = vmul.f32 %v355, %v619
    %v657 = vmul.f32 %v206, %v634
    %v658 = vadd.f32 %v656, %v657
    %s659 = sld [smem:[#allocation8 + $0x6]]
    %s660 = sld [smem:[#allocation9 + $0x6]]
    %v661 = vstv %s659
    %v662 = vmul.f32 %v661, %v637
    %v663 = vstv %s660
    %v664 = vmul.f32 %v663, %v649
    %v665 = vsub.f32 %v662, %v664
    %v666 = vmul.f32 %v661, %v640
    %v667 = vmul.f32 %v663, %v652
    %v668 = vsub.f32 %v666, %v667
    %v669 = vmul.f32 %v663, %v637
    %v670 = vmul.f32 %v661, %v649
    %v671 = vadd.f32 %v669, %v670
    %v672 = vmul.f32 %v663, %v640
    %v673 = vmul.f32 %v661, %v652
    %v674 = vadd.f32 %v672, %v673
    %v675 = vmul.f32 %v661, %v643
    %v676 = vmul.f32 %v663, %v655
    %v677 = vsub.f32 %v675, %v676
    %v678 = vmul.f32 %v661, %v646
    %v679 = vmul.f32 %v663, %v658
    %v680 = vsub.f32 %v678, %v679
    %v681 = vmul.f32 %v663, %v643
    %v682 = vmul.f32 %v661, %v655
    %v683 = vadd.f32 %v681, %v682
    %v684 = vmul.f32 %v663, %v646
    %v685 = vmul.f32 %v661, %v658
    %v686 = vadd.f32 %v684, %v685
    %s687 = sld [smem:[#allocation8 + $0x7]]
    %s688 = sld [smem:[#allocation9 + $0x7]]
    %v689 = vstv %s687
    %v690 = vmul.f32 %v689, %v665
    %v691 = vstv %s688
    %v692 = vmul.f32 %v691, %v677
    %v693 = vsub.f32 %v690, %v692
    %v694 = vmul.f32 %v689, %v668
    %v695 = vmul.f32 %v691, %v680
    %v696 = vsub.f32 %v694, %v695
    %v697 = vmul.f32 %v691, %v665
    %v698 = vmul.f32 %v689, %v677
    %v699 = vadd.f32 %v697, %v698
    %v700 = vmul.f32 %v691, %v668
    %v701 = vmul.f32 %v689, %v680
    %v702 = vadd.f32 %v700, %v701
    %v703 = vmul.f32 %v689, %v671
    %v704 = vmul.f32 %v691, %v683
    %v705 = vsub.f32 %v703, %v704
    %v706 = vmul.f32 %v689, %v674
    %v707 = vmul.f32 %v691, %v686
    %v708 = vsub.f32 %v706, %v707
    %v709 = vmul.f32 %v691, %v671
    %v710 = vmul.f32 %v689, %v683
    %v711 = vadd.f32 %v709, %v710
    %v712 = vmul.f32 %v691, %v674
    %v713 = vmul.f32 %v689, %v686
    %v714 = vadd.f32 %v712, %v713
    %s715 = sld [smem:[#allocation11 + $0xc]]
    %s716 = sld [smem:[#allocation12 + $0xc]]
    %v717 = vstv %s715
    %v718 = vmul.f32 %v693, %v717
    %v719 = vstv %s716
    %v720 = vmul.f32 %v696, %v719
    %v721 = vsub.f32 %v718, %v720
    %v722 = vmul.f32 %v693, %v719
    %v723 = vmul.f32 %v696, %v717
    %v724 = vadd.f32 %v722, %v723
    %s725 = sld [smem:[#allocation11 + $0xd]]
    %s726 = sld [smem:[#allocation12 + $0xd]]
    %v727 = vstv %s725
    %v728 = vmul.f32 %v699, %v727
    %v729 = vstv %s726
    %v730 = vmul.f32 %v702, %v729
    %v731 = vsub.f32 %v728, %v730
    %v732 = vmul.f32 %v699, %v729
    %v733 = vmul.f32 %v702, %v727
    %v734 = vadd.f32 %v732, %v733
    %s735 = sld [smem:[#allocation11 + $0xe]]
    %s736 = sld [smem:[#allocation12 + $0xe]]
    %v737 = vstv %s735
    %v738 = vmul.f32 %v705, %v737
    %v739 = vstv %s736
    %v740 = vmul.f32 %v708, %v739
    %v741 = vsub.f32 %v738, %v740
    %v742 = vmul.f32 %v705, %v739
    %v743 = vmul.f32 %v708, %v737
    %v744 = vadd.f32 %v742, %v743
    %s745 = sld [smem:[#allocation11 + $0xf]]
    %s746 = sld [smem:[#allocation12 + $0xf]]
    %v747 = vstv %s745
    %v748 = vmul.f32 %v711, %v747
    %v749 = vstv %s746
    %v750 = vmul.f32 %v714, %v749
    %v751 = vsub.f32 %v748, %v750
    %v752 = vmul.f32 %v711, %v749
    %v753 = vmul.f32 %v714, %v747
    %v754 = vadd.f32 %v752, %v753
    %v755 = vmul.f32 %v163, %v721
    %v756 = vmul.f32 %v180, %v744
    %v757 = vadd.f32 %v755, %v756
    %v758 = vmul.f32 %v163, %v724
    %v759 = vmul.f32 %v180, %v741
    %v760 = vsub.f32 %v758, %v759
    %v761 = vmul.f32 %v180, %v724
    %v762 = vmul.f32 %v163, %v741
    %v763 = vadd.f32 %v761, %v762
    %v764 = vmul.f32 %v330, %v721
    %v765 = vmul.f32 %v163, %v744
    %v766 = vadd.f32 %v764, %v765
    %v767 = vmul.f32 %v163, %v731
    %v768 = vmul.f32 %v180, %v754
    %v769 = vadd.f32 %v767, %v768
    %v770 = vmul.f32 %v163, %v734
    %v771 = vmul.f32 %v180, %v751
    %v772 = vsub.f32 %v770, %v771
    %v773 = vmul.f32 %v180, %v734
    %v774 = vmul.f32 %v163, %v751
    %v775 = vadd.f32 %v773, %v774
    %v776 = vmul.f32 %v330, %v731
    %v777 = vmul.f32 %v163, %v754
    %v778 = vadd.f32 %v776, %v777
    %v779 = vmul.f32 %v206, %v757
    %v780 = vmul.f32 %v223, %v772
    %v781 = vadd.f32 %v779, %v780
    %v782 = vmul.f32 %v206, %v760
    %v783 = vmul.f32 %v223, %v769
    %v784 = vsub.f32 %v782, %v783
    %v785 = vmul.f32 %v223, %v760
    %v786 = vmul.f32 %v206, %v769
    %v787 = vadd.f32 %v785, %v786
    %v788 = vmul.f32 %v355, %v757
    %v789 = vmul.f32 %v206, %v772
    %v790 = vadd.f32 %v788, %v789
    %v791 = vmul.f32 %v206, %v763
    %v792 = vmul.f32 %v223, %v778
    %v793 = vadd.f32 %v791, %v792
    %v794 = vmul.f32 %v206, %v766
    %v795 = vmul.f32 %v223, %v775
    %v796 = vsub.f32 %v794, %v795
    %v797 = vmul.f32 %v223, %v766
    %v798 = vmul.f32 %v206, %v775
    %v799 = vadd.f32 %v797, %v798
    %v800 = vmul.f32 %v355, %v763
    %v801 = vmul.f32 %v206, %v778
    %v802 = vadd.f32 %v800, %v801
    %s803 = sld [smem:[#allocation8 + $0x8]]
    %s804 = sld [smem:[#allocation9 + $0x8]]
    %v805 = vstv %s803
    %v806 = vmul.f32 %v805, %v781
    %v807 = vstv %s804
    %v808 = vmul.f32 %v807, %v793
    %v809 = vsub.f32 %v806, %v808
    %v810 = vmul.f32 %v805, %v784
    %v811 = vmul.f32 %v807, %v796
    %v812 = vsub.f32 %v810, %v811
    %v813 = vmul.f32 %v807, %v781
    %v814 = vmul.f32 %v805, %v793
    %v815 = vadd.f32 %v813, %v814
    %v816 = vmul.f32 %v807, %v784
    %v817 = vmul.f32 %v805, %v796
    %v818 = vadd.f32 %v816, %v817
    %v819 = vmul.f32 %v805, %v787
    %v820 = vmul.f32 %v807, %v799
    %v821 = vsub.f32 %v819, %v820
    %v822 = vmul.f32 %v805, %v790
    %v823 = vmul.f32 %v807, %v802
    %v824 = vsub.f32 %v822, %v823
    %v825 = vmul.f32 %v807, %v787
    %v826 = vmul.f32 %v805, %v799
    %v827 = vadd.f32 %v825, %v826
    %v828 = vmul.f32 %v807, %v790
    %v829 = vmul.f32 %v805, %v802
    %v830 = vadd.f32 %v828, %v829
    %s831 = sld [smem:[#allocation8 + $0x9]]
    %s832 = sld [smem:[#allocation9 + $0x9]]
    %v833 = vstv %s831
    %v834 = vmul.f32 %v833, %v809
    %v835 = vstv %s832
    %v836 = vmul.f32 %v835, %v821
    %v837 = vsub.f32 %v834, %v836
    %v838 = vmul.f32 %v833, %v812
    %v839 = vmul.f32 %v835, %v824
    %v840 = vsub.f32 %v838, %v839
    %v841 = vmul.f32 %v835, %v809
    %v842 = vmul.f32 %v833, %v821
    %v843 = vadd.f32 %v841, %v842
    %v844 = vmul.f32 %v835, %v812
    %v845 = vmul.f32 %v833, %v824
    %v846 = vadd.f32 %v844, %v845
    %v847 = vmul.f32 %v833, %v815
    %v848 = vmul.f32 %v835, %v827
    %v849 = vsub.f32 %v847, %v848
    %v850 = vmul.f32 %v833, %v818
    %v851 = vmul.f32 %v835, %v830
    %v852 = vsub.f32 %v850, %v851
    %v853 = vmul.f32 %v835, %v815
    %v854 = vmul.f32 %v833, %v827
    %v855 = vadd.f32 %v853, %v854
    %v856 = vmul.f32 %v835, %v818
    %v857 = vmul.f32 %v833, %v830
    %v858 = vadd.f32 %v856, %v857
    %s859 = sld [smem:[#allocation11 + $0x10]]
    %s860 = sld [smem:[#allocation12 + $0x10]]
    %v861 = vstv %s859
    %v862 = vmul.f32 %v837, %v861
    %v863 = vstv %s860
    %v864 = vmul.f32 %v840, %v863
    %v865 = vsub.f32 %v862, %v864
    %v866 = vmul.f32 %v837, %v863
    %v867 = vmul.f32 %v840, %v861
    %v868 = vadd.f32 %v866, %v867
    %s869 = sld [smem:[#allocation11 + $0x11]]
    %s870 = sld [smem:[#allocation12 + $0x11]]
    %v871 = vstv %s869
    %v872 = vmul.f32 %v843, %v871
    %v873 = vstv %s870
    %v874 = vmul.f32 %v846, %v873
    %v875 = vsub.f32 %v872, %v874
    %v876 = vmul.f32 %v843, %v873
    %v877 = vmul.f32 %v846, %v871
    %v878 = vadd.f32 %v876, %v877
    %s879 = sld [smem:[#allocation11 + $0x12]]
    %s880 = sld [smem:[#allocation12 + $0x12]]
    %v881 = vstv %s879
    %v882 = vmul.f32 %v849, %v881
    %v883 = vstv %s880
    %v884 = vmul.f32 %v852, %v883
    %v885 = vsub.f32 %v882, %v884
    %v886 = vmul.f32 %v849, %v883
    %v887 = vmul.f32 %v852, %v881
    %v888 = vadd.f32 %v886, %v887
    %s889 = sld [smem:[#allocation11 + $0x13]]
    %s890 = sld [smem:[#allocation12 + $0x13]]
    %v891 = vstv %s889
    %v892 = vmul.f32 %v855, %v891
    %v893 = vstv %s890
    %v894 = vmul.f32 %v858, %v893
    %v895 = vsub.f32 %v892, %v894
    %v896 = vmul.f32 %v855, %v893
    %v897 = vmul.f32 %v858, %v891
    %v898 = vadd.f32 %v896, %v897
    %v899 = vmul.f32 %v865, %v865
    %v900 = vmul.f32 %v868, %v868
    %v901 = vadd.f32 %v899, %v900
    %v902 = vmul.f32 %v875, %v875
    %v903 = vmul.f32 %v878, %v878
    %v904 = vadd.f32 %v902, %v903
    %v905 = vmul.f32 %v885, %v885
    %v906 = vmul.f32 %v888, %v888
    %v907 = vadd.f32 %v905, %v906
    %v908 = vmul.f32 %v895, %v895
    %v909 = vmul.f32 %v898, %v898
    %v910 = vadd.f32 %v908, %v909
    %s911 = sld [smem:[#allocation14]]
    %v912 = vstv %s911
    %v913 = vmul.f32 %v901, %v912
    %s914 = sld [smem:[#allocation14 + $0x1]]
    %v915 = vstv %s914
    %v916 = vmul.f32 %v904, %v915
    %v917 = vadd.f32 %v913, %v916
    %s918 = sld [smem:[#allocation14 + $0x2]]
    %v919 = vstv %s918
    %v920 = vmul.f32 %v907, %v919
    %v921 = vadd.f32 %v917, %v920
    %s922 = sld [smem:[#allocation14 + $0x3]]
    %v923 = vstv %s922
    %v924 = vmul.f32 %v910, %v923
    %v925 = vadd.f32 %v921, %v924
    %s926 = sld [smem:[#allocation15]]
    %v927 = vstv %s926
    %v928 = vadd.f32 %v925, %v927
    %929 = vst [vmem:[#allocation17] sm:$0xff] %v928
    %s930 = sld [smem:[#allocation14 + $0x4]]
    %v931 = vstv %s930
    %v932 = vmul.f32 %v901, %v931
    %s933 = sld [smem:[#allocation14 + $0x5]]
    %v934 = vstv %s933
    %v935 = vmul.f32 %v904, %v934
    %v936 = vadd.f32 %v932, %v935
    %s937 = sld [smem:[#allocation14 + $0x6]]
    %v938 = vstv %s937
    %v939 = vmul.f32 %v907, %v938
    %v940 = vadd.f32 %v936, %v939
    %s941 = sld [smem:[#allocation14 + $0x7]]
    %v942 = vstv %s941
    %v943 = vmul.f32 %v910, %v942
    %v944 = vadd.f32 %v940, %v943
    %s945 = sld [smem:[#allocation15 + $0x1]]
    %v946 = vstv %s945
    %v947 = vadd.f32 %v944, %v946
    %s948 = scalar_lea.vmem [#allocation17], 8
    %949 = vst [vmem:[%s948] sm:$0xff] %v947
    %s950 = sld [smem:[#allocation14 + $0x8]]
    %v951 = vstv %s950
    %v952 = vmul.f32 %v901, %v951
    %s953 = sld [smem:[#allocation14 + $0x9]]
    %v954 = vstv %s953
    %v955 = vmul.f32 %v904, %v954
    %v956 = vadd.f32 %v952, %v955
    %s957 = sld [smem:[#allocation14 + $0xa]]
    %v958 = vstv %s957
    %v959 = vmul.f32 %v907, %v958
    %v960 = vadd.f32 %v956, %v959
    %s961 = sld [smem:[#allocation14 + $0xb]]
    %v962 = vstv %s961
    %v963 = vmul.f32 %v910, %v962
    %v964 = vadd.f32 %v960, %v963
    %s965 = sld [smem:[#allocation15 + $0x2]]
    %v966 = vstv %s965
    %v967 = vadd.f32 %v964, %v966
    %s968 = scalar_lea.vmem [#allocation17], 16
    %969 = vst [vmem:[%s968] sm:$0xff] %v967
    // Predicated region
    $region66: #{tpu_custom_call.1} parent=1 // pred_check
      _
    $region67: #{tpu_custom_call.1} parent=1 // pred_check_branch
      %971 = sbr.rel (0) target = $region69
    $region68: #{tpu_custom_call.1} parent=1 // pred_region
      %973 = vsyncadd [#allocation4], 0
      %s974 = sshll.u32 [#allocation17], 4
      %s975 = int_to_ptr.vmem [resolvable:$true] %s974
      %s976 = sshll.u32 %s8, 4
      %s977 = int_to_ptr.hbm [resolvable:$true] %s976
      %982 = dma.vmem_to_hbm [thread:$0]  %s975, 384, %s977, [#allocation4], 128, 128, 8
    $region69: #{tpu_custom_call.1} parent=1 // pred_fallthru
      _
    // Predicated region
    $region70: #{tpu_custom_call.1} parent=1 // pred_check
      _
    $region71: #{tpu_custom_call.1} parent=1 // pred_check_branch
      %984 = sbr.rel (0) target = $region73
    $region72: #{tpu_custom_call.1} parent=1 // pred_region
      %986 = dma.done [#allocation4], 384
    $region73: #{tpu_custom_call.1} parent=1 // pred_fallthru
      _
    %987 = vsyncpa [#allocation3], 1
    %988 = vsyncpa [#allocation4], 1
    %989 = vsyncpa [#allocation5], 1
    %990 = vsyncpa [#allocation6], 1
    %991 = vsyncpa [#allocation10], 1
    %992 = vsyncpa [#allocation13], 1
    %993 = vsyncpa [#allocation16], 1

</llo_original>
